<compile_context>
chip_gen: v5e
topology: v5e:2x2
jax: 0.10.0
libtpu: 0.0.40
codegen_flags: <defaults>
</compile_context>

<pallas_src>
import functools

import jax
import jax.numpy as jnp
from jax import lax
from jax.experimental import pallas as pl
from jax.experimental.pallas import tpu as pltpu

_BN_EPS = 1e-5


# ----------------------------- Pallas kernels --------------------------------

def _shift_cols(a, s):
    """b[:, p] = a[:, (p + s) mod L] for static s (slice + lane concat).

    Only interior output positions are consumed downstream and those never
    wrap, so the circular wrap garbage is harmless (masked to zero)."""
    if s == 0:
        return a
    return jnp.concatenate([a[:, s:], a[:, :s]], axis=1)


def _conv_block_kernel(w_ref, scale_ref, shift_ref, mask_ref, x_ref,
                       y_ref, stats_ref, *, shifts, bn_relu_prologue):
    """One padded image of a block-complex conv; im2col done entirely in VMEM.

    w_ref     : (2*C_out, 2*C_in*kh*kw) block-complex weights (resident)
    scale_ref : (2*C_in, 1)  folded-BN scale for the *input* (conv2 prologue)
    shift_ref : (2*C_in, 1)  folded-BN shift for the *input* (conv2 prologue)
    mask_ref  : (1, L)       1.0 at interior (valid output) positions, else 0.0
    x_ref     : (1, 2*C_in, L)  padded-flat split-real activation
    y_ref     : (1, 2*C_out, L) conv output (interior values; 0 elsewhere)
    stats_ref : (1, 2*C_out, 2) per-image [sum, sum_sq] BN partials
    """
    x = x_ref[0]                                   # (2*C_in, L)
    mask = mask_ref[...]                           # (1, L)
    if bn_relu_prologue:
        # Fused BN1-apply + ComplexReLU; re-zero the pad ring so the conv taps
        # below still see proper zero padding.
        x = jnp.maximum(x * scale_ref[...] + shift_ref[...], 0.0) * mask
    # In-VMEM im2col: kh*kw lane-shifted copies stacked along sublanes.
    patch = jnp.concatenate([_shift_cols(x, s) for s in shifts], axis=0)
    out = jnp.dot(w_ref[...], patch, preferred_element_type=jnp.float32)
    out = out * mask                               # zero pad-ring / wrap garbage
    y_ref[0] = out.astype(y_ref.dtype)
    s1 = jnp.sum(out, axis=1, keepdims=True)       # (2*C_out, 1)
    s2 = jnp.sum(out * out, axis=1, keepdims=True)
    stats_ref[0] = jnp.concatenate([s1, s2], axis=1).astype(stats_ref.dtype)


def _bn_residual_relu_kernel(scale_ref, shift_ref, mask_ref, y_ref, r_ref, o_ref):
    """Fused epilogue: BN2 (folded affine) + identity residual + ComplexReLU."""
    y = y_ref[0] * scale_ref[...] + shift_ref[...] + r_ref[0]
    o_ref[0] = (jnp.maximum(y, 0.0) * mask_ref[...]).astype(o_ref.dtype)


# ------------------------------- glue (JAX) ----------------------------------

def _weight_block(w_re, w_im):
    """(C_out, C_in, KH, KW) real/imag -> (2*C_out, KH*KW*2*C_in) block-complex
    weight [[Wr, -Wi], [Wi, Wr]] with columns ordered (tap, [real C_in | imag
    C_in]) to match the in-kernel patch layout."""
    c_out, c_in, kh, kw = w_re.shape
    wr = jnp.transpose(w_re, (0, 2, 3, 1)).reshape(c_out, kh * kw, c_in)
    wi = jnp.transpose(w_im, (0, 2, 3, 1)).reshape(c_out, kh * kw, c_in)
    top = jnp.concatenate([wr, -wi], axis=2)       # rows for real outputs
    bot = jnp.concatenate([wi, wr], axis=2)        # rows for imag outputs
    return jnp.concatenate([top, bot], axis=0).reshape(2 * c_out, kh * kw * 2 * c_in)


def _bn_fold_from_stats(stats, count, eps=_BN_EPS):
    """Reduce per-image [sum, sum_sq] partials -> folded BN scale/shift.

    ComplexNaiveBatchnorm: batch stats over (N, H, W) per channel, real and
    imag normalized independently, gamma=1 / beta=0, biased variance."""
    tot = jnp.sum(stats, axis=0)                   # (2*C_out, 2)
    mean = tot[:, 0:1] / count
    var = jnp.maximum(tot[:, 1:2] / count - mean * mean, 0.0)
    scale = lax.rsqrt(var + eps)
    shift = -mean * scale
    return scale, shift


def _conv_pallas(x_flat, w_block, mask, scale, shift, *, shifts, bn_relu_prologue):
    n, two_cin, lpad = x_flat.shape
    two_cout, two_k = w_block.shape
    kern = functools.partial(_conv_block_kernel, shifts=shifts,
                             bn_relu_prologue=bn_relu_prologue)
    return pl.pallas_call(
        kern,
        out_shape=(jax.ShapeDtypeStruct((n, two_cout, lpad), jnp.float32),
                   jax.ShapeDtypeStruct((n, two_cout, 2), jnp.float32)),
        grid_spec=pltpu.PrefetchScalarGridSpec(
            num_scalar_prefetch=0,
            grid=(n,),
            in_specs=[
                pl.BlockSpec((two_cout, two_k), lambda i: (0, 0)),     # weights (resident)
                pl.BlockSpec((two_cin, 1), lambda i: (0, 0)),          # BN scale (input)
                pl.BlockSpec((two_cin, 1), lambda i: (0, 0)),          # BN shift (input)
                pl.BlockSpec((1, lpad), lambda i: (0, 0)),             # interior mask
                pl.BlockSpec((1, two_cin, lpad), lambda i: (i, 0, 0)),
            ],
            out_specs=[
                pl.BlockSpec((1, two_cout, lpad), lambda i: (i, 0, 0)),
                pl.BlockSpec((1, two_cout, 2), lambda i: (i, 0, 0)),
            ],
        ),
        compiler_params=pltpu.CompilerParams(
            dimension_semantics=("parallel",)),
    )(w_block, scale, shift, mask, x_flat)


def _epilogue_pallas(y2, res, mask, scale, shift):
    n, two_c, lpad = y2.shape
    return pl.pallas_call(
        _bn_residual_relu_kernel,
        out_shape=jax.ShapeDtypeStruct((n, two_c, lpad), jnp.float32),
        grid_spec=pltpu.PrefetchScalarGridSpec(
            num_scalar_prefetch=0,
            grid=(n,),
            in_specs=[
                pl.BlockSpec((two_c, 1), lambda i: (0, 0)),
                pl.BlockSpec((two_c, 1), lambda i: (0, 0)),
                pl.BlockSpec((1, lpad), lambda i: (0, 0)),
                pl.BlockSpec((1, two_c, lpad), lambda i: (i, 0, 0)),
                pl.BlockSpec((1, two_c, lpad), lambda i: (i, 0, 0)),
            ],
            out_specs=pl.BlockSpec((1, two_c, lpad), lambda i: (i, 0, 0)),
        ),
        compiler_params=pltpu.CompilerParams(
            dimension_semantics=("parallel",)),
    )(scale, shift, mask, y2, res)


@functools.partial(jax.jit, static_argnames=("stride", "padding"))
def residual_block_forward(x, w1_re, w1_im, w2_re, w2_im, *, stride=1, padding=1):
    """ResidualBlock forward (dim=2, resample=False, embedding=False, dropout=0).

    x           : complex64 (N, C_in, H, W)
    w*_re/w*_im : float32 (C_out, C_in, KH, KW) real/imag conv weights
    returns complex64 (N, C_out, H, W)
    """
    n, c_in, h, w = x.shape
    c_out, _, kh, kw = w1_re.shape
    assert stride == 1 and c_in == c_out, "identity residual needs stride=1, C_in==C_out"
    pad = padding
    hp, wp = h + 2 * pad, w + 2 * pad
    assert hp - kh + 1 == h and wp - kw + 1 == w, "identity residual needs 'same' conv"

    # Split-real layout (N, 2C, H, W): channels 0:C real, C:2C imag.  Zero-pad
    # the spatial dims once, flatten to a lane-dense padded-flat layout
    # (N, 2C, Lpad) with Lpad a multiple of 128 (unmasked lane-wide stores).
    xs = jnp.concatenate([jnp.real(x), jnp.imag(x)], axis=1).astype(jnp.float32)
    xs = jnp.pad(xs, ((0, 0), (0, 0), (pad, pad), (pad, pad)))
    lp = hp * wp
    lpad = pl.cdiv(lp, 128) * 128
    xs_flat = xs.reshape(n, 2 * c_in, lp)
    if lpad != lp:
        xs_flat = jnp.pad(xs_flat, ((0, 0), (0, 0), (0, lpad - lp)))

    # Interior mask over the padded-flat axis (= valid conv-output positions).
    pos = jnp.arange(lpad)
    r, c = pos // wp, pos % wp
    interior = (pos < lp) & (r >= pad) & (r < hp - pad) & (c >= pad) & (c < wp - pad)
    mask = interior.astype(jnp.float32)[None, :]

    # Static lane shifts for the kh*kw taps (offsets in padded-flat coords).
    shifts = tuple((ki - pad) * wp + (kj - pad)
                   for ki in range(kh) for kj in range(kw))

    w1_blk = _weight_block(w1_re, w1_im)
    w2_blk = _weight_block(w2_re, w2_im)
    count = n * h * w

    dummy_s = jnp.ones((2 * c_in, 1), jnp.float32)
    dummy_b = jnp.zeros((2 * c_in, 1), jnp.float32)

    # conv1 (+ in-kernel BN1 partial statistics).
    y1, st1 = _conv_pallas(xs_flat, w1_blk, mask, dummy_s, dummy_b,
                           shifts=shifts, bn_relu_prologue=False)
    s1, b1 = _bn_fold_from_stats(st1, count)

    # conv2 with fused BN1-apply + ComplexReLU prologue (+ BN2 partial stats).
    # TODO(synk): ComplexDropout(p=0.0) is the identity; nonzero p not implemented.
    y2, st2 = _conv_pallas(y1, w2_blk, mask, s1, b1,
                           shifts=shifts, bn_relu_prologue=True)
    s2, b2 = _bn_fold_from_stats(st2, count)

    # Fused epilogue: BN2 + identity residual + final ComplexReLU.
    out_flat = _epilogue_pallas(y2, xs_flat, mask, s2, b2)

    # Back to complex NCHW (interior extraction of the padded-flat layout).
    out = out_flat[:, :, :lp].reshape(n, 2 * c_out, hp, wp)[:, :, pad:pad + h, pad:pad + w]
    return lax.complex(out[:, :c_out], out[:, c_out:])


# ------------------------------ reference ------------------------------------

def _conv2d_ref(x, w, stride, padding):
    return lax.conv_general_dilated(
        x, w, window_strides=(stride, stride),
        padding=[(padding, padding), (padding, padding)],
        dimension_numbers=("NCHW", "OIHW", "NCHW"),
        precision=lax.Precision.HIGHEST)


def residual_block_ref(x, w1_re, w1_im, w2_re, w2_im, stride, padding, eps=_BN_EPS):
    def cconv(z, wre, wim):
        zr = jnp.real(z).astype(jnp.float32)
        zi = jnp.imag(z).astype(jnp.float32)
        real = _conv2d_ref(zr, wre, stride, padding) - _conv2d_ref(zi, wim, stride, padding)
        imag = _conv2d_ref(zi, wre, stride, padding) + _conv2d_ref(zr, wim, stride, padding)
        return real, imag

    def bn(t):  # naive BN: per-channel batch stats over (N, H, W), gamma=1, beta=0
        mean = jnp.mean(t, axis=(0, 2, 3), keepdims=True)
        var = jnp.mean(jnp.square(t - mean), axis=(0, 2, 3), keepdims=True)
        return (t - mean) * lax.rsqrt(var + eps)

    r1, i1 = cconv(x, w1_re, w1_im)
    r1, i1 = jnp.maximum(bn(r1), 0.0), jnp.maximum(bn(i1), 0.0)     # BN + ComplexReLU
    r2, i2 = cconv(lax.complex(r1, i1), w2_re, w2_im)
    r2, i2 = bn(r2), bn(i2)
    xr = jnp.real(x).astype(jnp.float32)
    xi = jnp.imag(x).astype(jnp.float32)
    return lax.complex(jnp.maximum(r2 + xr, 0.0), jnp.maximum(i2 + xi, 0.0))


# --------------------------------- main ---------------------------------------

if __name__ == "__main__":
    # Module config: in_channels=4, out_channels=4, kernel_size=3, dim=2,
    # stride=1, padding=1, dilation=1, dropout=0.0, resample=False, embedding=False.
    N, C_IN, C_OUT, H, W = 2, 4, 4, 16, 16
    KH = KW = 3
    STRIDE, PADDING = 1, 1

    key = jax.random.PRNGKey(0)
    k_xr, k_xi, k_w1r, k_w1i, k_w2r, k_w2i = jax.random.split(key, 6)

    fan_in = C_IN * KH * KW
    wscale = 1.0 / (fan_in ** 0.5)
    w1_re = jax.random.uniform(k_w1r, (C_OUT, C_IN, KH, KW), jnp.float32, -wscale, wscale)
    w1_im = jax.random.uniform(k_w1i, (C_OUT, C_IN, KH, KW), jnp.float32, -wscale, wscale)
    w2_re = jax.random.uniform(k_w2r, (C_OUT, C_OUT, KH, KW), jnp.float32, -wscale, wscale)
    w2_im = jax.random.uniform(k_w2i, (C_OUT, C_OUT, KH, KW), jnp.float32, -wscale, wscale)

    x = lax.complex(
        jax.random.normal(k_xr, (N, C_IN, H, W), jnp.float32),
        jax.random.normal(k_xi, (N, C_IN, H, W), jnp.float32),
    )

    out = residual_block_forward(x, w1_re, w1_im, w2_re, w2_im,
                                 stride=STRIDE, padding=PADDING)
    out = jax.block_until_ready(out)

    ref = residual_block_ref(x, w1_re, w1_im, w2_re, w2_im, STRIDE, PADDING)
    assert out.shape == (N, C_OUT, H, W), out.shape
    assert out.dtype == jnp.complex64, out.dtype
    # Two chained 72-term contractions + BN normalization; f32 everywhere, so a
    # 2e-3 tolerance is comfortably loose while still catching any real bug
    # (wrong tap ordering / weight layout would give O(1) errors).
    err = float(jnp.max(jnp.abs(out - ref)))
    assert jnp.allclose(out, ref, atol=2e-3, rtol=2e-3), f"mismatch vs reference: {err}"

    print("KERNEL_OK")
</pallas_src>

<mosaic_0001>
module attributes {stable_mosaic.version = 11 : i64} {
  func.func @_bn_residual_relu_kernel(%arg0: i32, %arg1: memref<8x1xf32, #tpu.memory_space<vmem>>, %arg2: memref<8x1xf32, #tpu.memory_space<vmem>>, %arg3: memref<1x384xf32, #tpu.memory_space<vmem>>, %arg4: memref<1x8x384xf32, #tpu.memory_space<vmem>>, %arg5: memref<1x8x384xf32, #tpu.memory_space<vmem>>, %arg6: memref<1x8x384xf32, #tpu.memory_space<vmem>>) attributes {dimension_semantics = [#tpu.dimension_semantics<parallel>], iteration_bounds = array<i64: 2>, scalar_prefetch = 0 : i64, scratch_operands = 0 : i64, tpu.core_type = #tpu.core_type<tc>, window_params = [{pipeline_mode = #tpu.pipeline_mode<synchronous>, transform_indices = @transform_0, window_bounds = array<i64: 8, 1>}, {pipeline_mode = #tpu.pipeline_mode<synchronous>, transform_indices = @transform_1, window_bounds = array<i64: 8, 1>}, {pipeline_mode = #tpu.pipeline_mode<synchronous>, transform_indices = @transform_2, window_bounds = array<i64: 1, 384>}, {transform_indices = @transform_3, window_bounds = array<i64: 1, 8, 384>}, {transform_indices = @transform_4, window_bounds = array<i64: 1, 8, 384>}, {transform_indices = @transform_5, window_bounds = array<i64: 1, 8, 384>}]} {
    %c0 = arith.constant 0 : index
    %c0_0 = arith.constant 0 : index
    %c0_1 = arith.constant 0 : index
    %0 = vector.load %arg4[%c0, %c0_0, %c0_1] : memref<1x8x384xf32, #tpu.memory_space<vmem>>, vector<1x8x384xf32>
    %1 = vector.shape_cast %0 : vector<1x8x384xf32> to vector<8x384xf32>
    %c0_2 = arith.constant 0 : index
    %c0_3 = arith.constant 0 : index
    %2 = vector.load %arg1[%c0_2, %c0_3] : memref<8x1xf32, #tpu.memory_space<vmem>>, vector<8x1xf32>
    %3 = vector.broadcast %2 : vector<8x1xf32> to vector<8x384xf32>
    %4 = arith.mulf %1, %3 : vector<8x384xf32>
    %c0_4 = arith.constant 0 : index
    %c0_5 = arith.constant 0 : index
    %5 = vector.load %arg2[%c0_4, %c0_5] : memref<8x1xf32, #tpu.memory_space<vmem>>, vector<8x1xf32>
    %6 = vector.broadcast %5 : vector<8x1xf32> to vector<8x384xf32>
    %7 = arith.addf %4, %6 : vector<8x384xf32>
    %c0_6 = arith.constant 0 : index
    %c0_7 = arith.constant 0 : index
    %c0_8 = arith.constant 0 : index
    %8 = vector.load %arg5[%c0_6, %c0_7, %c0_8] : memref<1x8x384xf32, #tpu.memory_space<vmem>>, vector<1x8x384xf32>
    %9 = vector.shape_cast %8 : vector<1x8x384xf32> to vector<8x384xf32>
    %10 = arith.addf %7, %9 : vector<8x384xf32>
    %cst = arith.constant 0.000000e+00 : f32
    %11 = vector.broadcast %cst : f32 to vector<8x384xf32>
    %12 = arith.maximumf %10, %11 : vector<8x384xf32>
    %c0_9 = arith.constant 0 : index
    %c0_10 = arith.constant 0 : index
    %13 = vector.load %arg3[%c0_9, %c0_10] : memref<1x384xf32, #tpu.memory_space<vmem>>, vector<1x384xf32>
    %14 = vector.broadcast %13 : vector<1x384xf32> to vector<8x384xf32>
    %15 = arith.mulf %12, %14 : vector<8x384xf32>
    %c0_11 = arith.constant 0 : index
    %c0_12 = arith.constant 0 : index
    %c0_13 = arith.constant 0 : index
    %16 = vector.load %arg6[%c0_11, %c0_12, %c0_13] : memref<1x8x384xf32, #tpu.memory_space<vmem>>, vector<1x8x384xf32>
    %17 = vector.shape_cast %16 : vector<1x8x384xf32> to vector<8x384xf32>
    %18 = vector.shape_cast %15 : vector<8x384xf32> to vector<1x8x384xf32>
    tpu.vector_store %arg6[%c0_11, %c0_12, %c0_13], %18 {strides = array<i32>} : memref<1x8x384xf32, #tpu.memory_space<vmem>>, vector<1x8x384xf32>,
    return
  }
  func.func @transform_0(%arg0: i32) -> (i32, i32) {
    %c0_i32 = arith.constant 0 : i32
    %c0_i32_0 = arith.constant 0 : i32
    %c0_i32_1 = arith.constant 0 : i32
    return %c0_i32, %c0_i32_0 : i32, i32
  }
  func.func @transform_1(%arg0: i32) -> (i32, i32) {
    %c0_i32 = arith.constant 0 : i32
    %c0_i32_0 = arith.constant 0 : i32
    %c0_i32_1 = arith.constant 0 : i32
    return %c0_i32, %c0_i32_0 : i32, i32
  }
  func.func @transform_2(%arg0: i32) -> (i32, i32) {
    %c0_i32 = arith.constant 0 : i32
    %c0_i32_0 = arith.constant 0 : i32
    %c0_i32_1 = arith.constant 0 : i32
    return %c0_i32, %c0_i32_0 : i32, i32
  }
  func.func @transform_3(%arg0: i32) -> (i32, i32, i32) {
    %c0_i32 = arith.constant 0 : i32
    %c0_i32_0 = arith.constant 0 : i32
    %c0_i32_1 = arith.constant 0 : i32
    return %arg0, %c0_i32, %c0_i32_0 : i32, i32, i32
  }
  func.func @transform_4(%arg0: i32) -> (i32, i32, i32) {
    %c0_i32 = arith.constant 0 : i32
    %c0_i32_0 = arith.constant 0 : i32
    %c0_i32_1 = arith.constant 0 : i32
    return %arg0, %c0_i32, %c0_i32_0 : i32, i32, i32
  }
  func.func @transform_5(%arg0: i32) -> (i32, i32, i32) {
    %c0_i32 = arith.constant 0 : i32
    %c0_i32_0 = arith.constant 0 : i32
    %c0_i32_1 = arith.constant 0 : i32
    return %arg0, %c0_i32, %c0_i32_0 : i32, i32, i32
  }
}

module attributes {stable_mosaic.version = 11 : i64} {
  func.func @_conv_block_kernel(%arg0: i32, %arg1: memref<8x72xf32, #tpu.memory_space<vmem>>, %arg2: memref<8x1xf32, #tpu.memory_space<vmem>>, %arg3: memref<8x1xf32, #tpu.memory_space<vmem>>, %arg4: memref<1x384xf32, #tpu.memory_space<vmem>>, %arg5: memref<1x8x384xf32, #tpu.memory_space<vmem>>, %arg6: memref<1x8x384xf32, #tpu.memory_space<vmem>>, %arg7: memref<1x8x2xf32, #tpu.memory_space<vmem>>) attributes {dimension_semantics = [#tpu.dimension_semantics<parallel>], iteration_bounds = array<i64: 2>, scalar_prefetch = 0 : i64, scratch_operands = 0 : i64, tpu.core_type = #tpu.core_type<tc>, window_params = [{pipeline_mode = #tpu.pipeline_mode<synchronous>, transform_indices = @transform_0, window_bounds = array<i64: 8, 72>}, {pipeline_mode = #tpu.pipeline_mode<synchronous>, transform_indices = @transform_1, window_bounds = array<i64: 8, 1>}, {pipeline_mode = #tpu.pipeline_mode<synchronous>, transform_indices = @transform_2, window_bounds = array<i64: 8, 1>}, {pipeline_mode = #tpu.pipeline_mode<synchronous>, transform_indices = @transform_3, window_bounds = array<i64: 1, 384>}, {transform_indices = @transform_4, window_bounds = array<i64: 1, 8, 384>}, {transform_indices = @transform_5, window_bounds = array<i64: 1, 8, 384>}, {transform_indices = @transform_6, window_bounds = array<i64: 1, 8, 2>}]} {
    %c0 = arith.constant 0 : index
    %c0_0 = arith.constant 0 : index
    %c0_1 = arith.constant 0 : index
    %0 = vector.load %arg5[%c0, %c0_0, %c0_1] : memref<1x8x384xf32, #tpu.memory_space<vmem>>, vector<1x8x384xf32>
    %1 = vector.shape_cast %0 : vector<1x8x384xf32> to vector<8x384xf32>
    %c0_2 = arith.constant 0 : index
    %c0_3 = arith.constant 0 : index
    %2 = vector.load %arg4[%c0_2, %c0_3] : memref<1x384xf32, #tpu.memory_space<vmem>>, vector<1x384xf32>
    %3 = vector.extract_strided_slice %1 {offsets = [0, 365], sizes = [8, 19], strides = [1, 1]} : vector<8x384xf32> to vector<8x19xf32>
    %4 = vector.extract_strided_slice %1 {offsets = [0, 0], sizes = [8, 365], strides = [1, 1]} : vector<8x384xf32> to vector<8x365xf32>
    %5 = tpu.concatenate %3, %4 in 1 : vector<8x19xf32>, vector<8x365xf32> -> vector<8x384xf32>
    %6 = vector.extract_strided_slice %1 {offsets = [0, 366], sizes = [8, 18], strides = [1, 1]} : vector<8x384xf32> to vector<8x18xf32>
    %7 = vector.extract_strided_slice %1 {offsets = [0, 0], sizes = [8, 366], strides = [1, 1]} : vector<8x384xf32> to vector<8x366xf32>
    %8 = tpu.concatenate %6, %7 in 1 : vector<8x18xf32>, vector<8x366xf32> -> vector<8x384xf32>
    %9 = vector.extract_strided_slice %1 {offsets = [0, 367], sizes = [8, 17], strides = [1, 1]} : vector<8x384xf32> to vector<8x17xf32>
    %10 = vector.extract_strided_slice %1 {offsets = [0, 0], sizes = [8, 367], strides = [1, 1]} : vector<8x384xf32> to vector<8x367xf32>
    %11 = tpu.concatenate %9, %10 in 1 : vector<8x17xf32>, vector<8x367xf32> -> vector<8x384xf32>
    %12 = vector.extract_strided_slice %1 {offsets = [0, 383], sizes = [8, 1], strides = [1, 1]} : vector<8x384xf32> to vector<8x1xf32>
    %13 = vector.extract_strided_slice %1 {offsets = [0, 0], sizes = [8, 383], strides = [1, 1]} : vector<8x384xf32> to vector<8x383xf32>
    %14 = tpu.concatenate %12, %13 in 1 : vector<8x1xf32>, vector<8x383xf32> -> vector<8x384xf32>
    %15 = vector.extract_strided_slice %1 {offsets = [0, 1], sizes = [8, 383], strides = [1, 1]} : vector<8x384xf32> to vector<8x383xf32>
    %16 = vector.extract_strided_slice %1 {offsets = [0, 0], sizes = [8, 1], strides = [1, 1]} : vector<8x384xf32> to vector<8x1xf32>
    %17 = tpu.concatenate %15, %16 in 1 : vector<8x383xf32>, vector<8x1xf32> -> vector<8x384xf32>
    %18 = vector.extract_strided_slice %1 {offsets = [0, 17], sizes = [8, 367], strides = [1, 1]} : vector<8x384xf32> to vector<8x367xf32>
    %19 = vector.extract_strided_slice %1 {offsets = [0, 0], sizes = [8, 17], strides = [1, 1]} : vector<8x384xf32> to vector<8x17xf32>
    %20 = tpu.concatenate %18, %19 in 1 : vector<8x367xf32>, vector<8x17xf32> -> vector<8x384xf32>
    %21 = vector.extract_strided_slice %1 {offsets = [0, 18], sizes = [8, 366], strides = [1, 1]} : vector<8x384xf32> to vector<8x366xf32>
    %22 = vector.extract_strided_slice %1 {offsets = [0, 0], sizes = [8, 18], strides = [1, 1]} : vector<8x384xf32> to vector<8x18xf32>
    %23 = tpu.concatenate %21, %22 in 1 : vector<8x366xf32>, vector<8x18xf32> -> vector<8x384xf32>
    %24 = vector.extract_strided_slice %1 {offsets = [0, 19], sizes = [8, 365], strides = [1, 1]} : vector<8x384xf32> to vector<8x365xf32>
    %25 = vector.extract_strided_slice %1 {offsets = [0, 0], sizes = [8, 19], strides = [1, 1]} : vector<8x384xf32> to vector<8x19xf32>
    %26 = tpu.concatenate %24, %25 in 1 : vector<8x365xf32>, vector<8x19xf32> -> vector<8x384xf32>
    %27 = tpu.concatenate %5, %8, %11, %14, %1, %17, %20, %23, %26 in 0 : vector<8x384xf32>, vector<8x384xf32>, vector<8x384xf32>, vector<8x384xf32>, vector<8x384xf32>, vector<8x384xf32>, vector<8x384xf32>, vector<8x384xf32>, vector<8x384xf32> -> vector<72x384xf32>
    %c0_4 = arith.constant 0 : index
    %c0_5 = arith.constant 0 : index
    %28 = vector.load %arg1[%c0_4, %c0_5] : memref<8x72xf32, #tpu.memory_space<vmem>>, vector<8x72xf32>
    %cst = arith.constant dense<0.000000e+00> : vector<8x384xf32>
    %29 = tpu.matmul %28, %27, %cst {dimension_numbers = #tpu.dot_dimension_numbers<[1], [0], [0], [1], [0, 0, 1, 1], [], []>} : vector<8x72xf32>, vector<72x384xf32>, vector<8x384xf32> -> vector<8x384xf32>
    %30 = vector.broadcast %2 : vector<1x384xf32> to vector<8x384xf32>
    %31 = arith.mulf %29, %30 : vector<8x384xf32>
    %c0_6 = arith.constant 0 : index
    %c0_7 = arith.constant 0 : index
    %c0_8 = arith.constant 0 : index
    %32 = vector.load %arg6[%c0_6, %c0_7, %c0_8] : memref<1x8x384xf32, #tpu.memory_space<vmem>>, vector<1x8x384xf32>
    %33 = vector.shape_cast %32 : vector<1x8x384xf32> to vector<8x384xf32>
    %34 = vector.shape_cast %31 : vector<8x384xf32> to vector<1x8x384xf32>
    tpu.vector_store %arg6[%c0_6, %c0_7, %c0_8], %34 {strides = array<i32>} : memref<1x8x384xf32, #tpu.memory_space<vmem>>, vector<1x8x384xf32>,
    %cst_9 = arith.constant dense<0.000000e+00> : vector<8xf32>
    %35 = vector.multi_reduction <add>, %31, %cst_9 [1] : vector<8x384xf32> to vector<8xf32>
    %36 = vector.shape_cast %35 : vector<8xf32> to vector<8x1xf32>
    %37 = arith.mulf %31, %31 : vector<8x384xf32>
    %cst_10 = arith.constant dense<0.000000e+00> : vector<8xf32>
    %38 = vector.multi_reduction <add>, %37, %cst_10 [1] : vector<8x384xf32> to vector<8xf32>
    %39 = vector.shape_cast %38 : vector<8xf32> to vector<8x1xf32>
    %40 = tpu.concatenate %36, %39 in 1 : vector<8x1xf32>, vector<8x1xf32> -> vector<8x2xf32>
    %c0_11 = arith.constant 0 : index
    %c0_12 = arith.constant 0 : index
    %c0_13 = arith.constant 0 : index
    %41 = vector.load %arg7[%c0_11, %c0_12, %c0_13] : memref<1x8x2xf32, #tpu.memory_space<vmem>>, vector<1x8x2xf32>
    %42 = vector.shape_cast %41 : vector<1x8x2xf32> to vector<8x2xf32>
    %43 = vector.shape_cast %40 : vector<8x2xf32> to vector<1x8x2xf32>
    tpu.vector_store %arg7[%c0_11, %c0_12, %c0_13], %43 {strides = array<i32>} : memref<1x8x2xf32, #tpu.memory_space<vmem>>, vector<1x8x2xf32>,
    return
  }
  func.func @transform_0(%arg0: i32) -> (i32, i32) {
    %c0_i32 = arith.constant 0 : i32
    %c0_i32_0 = arith.constant 0 : i32
    %c0_i32_1 = arith.constant 0 : i32
    return %c0_i32, %c0_i32_0 : i32, i32
  }
  func.func @transform_1(%arg0: i32) -> (i32, i32) {
    %c0_i32 = arith.constant 0 : i32
    %c0_i32_0 = arith.constant 0 : i32
    %c0_i32_1 = arith.constant 0 : i32
    return %c0_i32, %c0_i32_0 : i32, i32
  }
  func.func @transform_2(%arg0: i32) -> (i32, i32) {
    %c0_i32 = arith.constant 0 : i32
    %c0_i32_0 = arith.constant 0 : i32
    %c0_i32_1 = arith.constant 0 : i32
    return %c0_i32, %c0_i32_0 : i32, i32
  }
  func.func @transform_3(%arg0: i32) -> (i32, i32) {
    %c0_i32 = arith.constant 0 : i32
    %c0_i32_0 = arith.constant 0 : i32
    %c0_i32_1 = arith.constant 0 : i32
    return %c0_i32, %c0_i32_0 : i32, i32
  }
  func.func @transform_4(%arg0: i32) -> (i32, i32, i32) {
    %c0_i32 = arith.constant 0 : i32
    %c0_i32_0 = arith.constant 0 : i32
    %c0_i32_1 = arith.constant 0 : i32
    return %arg0, %c0_i32, %c0_i32_0 : i32, i32, i32
  }
  func.func @transform_5(%arg0: i32) -> (i32, i32, i32) {
    %c0_i32 = arith.constant 0 : i32
    %c0_i32_0 = arith.constant 0 : i32
    %c0_i32_1 = arith.constant 0 : i32
    return %arg0, %c0_i32, %c0_i32_0 : i32, i32, i32
  }
  func.func @transform_6(%arg0: i32) -> (i32, i32, i32) {
    %c0_i32 = arith.constant 0 : i32
    %c0_i32_0 = arith.constant 0 : i32
    %c0_i32_1 = arith.constant 0 : i32
    return %arg0, %c0_i32, %c0_i32_0 : i32, i32, i32
  }
}

module attributes {stable_mosaic.version = 11 : i64} {
  func.func @_conv_block_kernel(%arg0: i32, %arg1: memref<8x72xf32, #tpu.memory_space<vmem>>, %arg2: memref<8x1xf32, #tpu.memory_space<vmem>>, %arg3: memref<8x1xf32, #tpu.memory_space<vmem>>, %arg4: memref<1x384xf32, #tpu.memory_space<vmem>>, %arg5: memref<1x8x384xf32, #tpu.memory_space<vmem>>, %arg6: memref<1x8x384xf32, #tpu.memory_space<vmem>>, %arg7: memref<1x8x2xf32, #tpu.memory_space<vmem>>) attributes {dimension_semantics = [#tpu.dimension_semantics<parallel>], iteration_bounds = array<i64: 2>, scalar_prefetch = 0 : i64, scratch_operands = 0 : i64, tpu.core_type = #tpu.core_type<tc>, window_params = [{pipeline_mode = #tpu.pipeline_mode<synchronous>, transform_indices = @transform_0, window_bounds = array<i64: 8, 72>}, {pipeline_mode = #tpu.pipeline_mode<synchronous>, transform_indices = @transform_1, window_bounds = array<i64: 8, 1>}, {pipeline_mode = #tpu.pipeline_mode<synchronous>, transform_indices = @transform_2, window_bounds = array<i64: 8, 1>}, {pipeline_mode = #tpu.pipeline_mode<synchronous>, transform_indices = @transform_3, window_bounds = array<i64: 1, 384>}, {transform_indices = @transform_4, window_bounds = array<i64: 1, 8, 384>}, {transform_indices = @transform_5, window_bounds = array<i64: 1, 8, 384>}, {transform_indices = @transform_6, window_bounds = array<i64: 1, 8, 2>}]} {
    %c0 = arith.constant 0 : index
    %c0_0 = arith.constant 0 : index
    %c0_1 = arith.constant 0 : index
    %0 = vector.load %arg5[%c0, %c0_0, %c0_1] : memref<1x8x384xf32, #tpu.memory_space<vmem>>, vector<1x8x384xf32>
    %1 = vector.shape_cast %0 : vector<1x8x384xf32> to vector<8x384xf32>
    %c0_2 = arith.constant 0 : index
    %c0_3 = arith.constant 0 : index
    %2 = vector.load %arg4[%c0_2, %c0_3] : memref<1x384xf32, #tpu.memory_space<vmem>>, vector<1x384xf32>
    %c0_4 = arith.constant 0 : index
    %c0_5 = arith.constant 0 : index
    %3 = vector.load %arg2[%c0_4, %c0_5] : memref<8x1xf32, #tpu.memory_space<vmem>>, vector<8x1xf32>
    %4 = vector.broadcast %3 : vector<8x1xf32> to vector<8x384xf32>
    %5 = arith.mulf %1, %4 : vector<8x384xf32>
    %c0_6 = arith.constant 0 : index
    %c0_7 = arith.constant 0 : index
    %6 = vector.load %arg3[%c0_6, %c0_7] : memref<8x1xf32, #tpu.memory_space<vmem>>, vector<8x1xf32>
    %7 = vector.broadcast %6 : vector<8x1xf32> to vector<8x384xf32>
    %8 = arith.addf %5, %7 : vector<8x384xf32>
    %cst = arith.constant 0.000000e+00 : f32
    %9 = vector.broadcast %cst : f32 to vector<8x384xf32>
    %10 = arith.maximumf %8, %9 : vector<8x384xf32>
    %11 = vector.broadcast %2 : vector<1x384xf32> to vector<8x384xf32>
    %12 = arith.mulf %10, %11 : vector<8x384xf32>
    %13 = vector.extract_strided_slice %12 {offsets = [0, 365], sizes = [8, 19], strides = [1, 1]} : vector<8x384xf32> to vector<8x19xf32>
    %14 = vector.extract_strided_slice %12 {offsets = [0, 0], sizes = [8, 365], strides = [1, 1]} : vector<8x384xf32> to vector<8x365xf32>
    %15 = tpu.concatenate %13, %14 in 1 : vector<8x19xf32>, vector<8x365xf32> -> vector<8x384xf32>
    %16 = vector.extract_strided_slice %12 {offsets = [0, 366], sizes = [8, 18], strides = [1, 1]} : vector<8x384xf32> to vector<8x18xf32>
    %17 = vector.extract_strided_slice %12 {offsets = [0, 0], sizes = [8, 366], strides = [1, 1]} : vector<8x384xf32> to vector<8x366xf32>
    %18 = tpu.concatenate %16, %17 in 1 : vector<8x18xf32>, vector<8x366xf32> -> vector<8x384xf32>
    %19 = vector.extract_strided_slice %12 {offsets = [0, 367], sizes = [8, 17], strides = [1, 1]} : vector<8x384xf32> to vector<8x17xf32>
    %20 = vector.extract_strided_slice %12 {offsets = [0, 0], sizes = [8, 367], strides = [1, 1]} : vector<8x384xf32> to vector<8x367xf32>
    %21 = tpu.concatenate %19, %20 in 1 : vector<8x17xf32>, vector<8x367xf32> -> vector<8x384xf32>
    %22 = vector.extract_strided_slice %12 {offsets = [0, 383], sizes = [8, 1], strides = [1, 1]} : vector<8x384xf32> to vector<8x1xf32>
    %23 = vector.extract_strided_slice %12 {offsets = [0, 0], sizes = [8, 383], strides = [1, 1]} : vector<8x384xf32> to vector<8x383xf32>
    %24 = tpu.concatenate %22, %23 in 1 : vector<8x1xf32>, vector<8x383xf32> -> vector<8x384xf32>
    %25 = vector.extract_strided_slice %12 {offsets = [0, 1], sizes = [8, 383], strides = [1, 1]} : vector<8x384xf32> to vector<8x383xf32>
    %26 = vector.extract_strided_slice %12 {offsets = [0, 0], sizes = [8, 1], strides = [1, 1]} : vector<8x384xf32> to vector<8x1xf32>
    %27 = tpu.concatenate %25, %26 in 1 : vector<8x383xf32>, vector<8x1xf32> -> vector<8x384xf32>
    %28 = vector.extract_strided_slice %12 {offsets = [0, 17], sizes = [8, 367], strides = [1, 1]} : vector<8x384xf32> to vector<8x367xf32>
    %29 = vector.extract_strided_slice %12 {offsets = [0, 0], sizes = [8, 17], strides = [1, 1]} : vector<8x384xf32> to vector<8x17xf32>
    %30 = tpu.concatenate %28, %29 in 1 : vector<8x367xf32>, vector<8x17xf32> -> vector<8x384xf32>
    %31 = vector.extract_strided_slice %12 {offsets = [0, 18], sizes = [8, 366], strides = [1, 1]} : vector<8x384xf32> to vector<8x366xf32>
    %32 = vector.extract_strided_slice %12 {offsets = [0, 0], sizes = [8, 18], strides = [1, 1]} : vector<8x384xf32> to vector<8x18xf32>
    %33 = tpu.concatenate %31, %32 in 1 : vector<8x366xf32>, vector<8x18xf32> -> vector<8x384xf32>
    %34 = vector.extract_strided_slice %12 {offsets = [0, 19], sizes = [8, 365], strides = [1, 1]} : vector<8x384xf32> to vector<8x365xf32>
    %35 = vector.extract_strided_slice %12 {offsets = [0, 0], sizes = [8, 19], strides = [1, 1]} : vector<8x384xf32> to vector<8x19xf32>
    %36 = tpu.concatenate %34, %35 in 1 : vector<8x365xf32>, vector<8x19xf32> -> vector<8x384xf32>
    %37 = tpu.concatenate %15, %18, %21, %24, %12, %27, %30, %33, %36 in 0 : vector<8x384xf32>, vector<8x384xf32>, vector<8x384xf32>, vector<8x384xf32>, vector<8x384xf32>, vector<8x384xf32>, vector<8x384xf32>, vector<8x384xf32>, vector<8x384xf32> -> vector<72x384xf32>
    %c0_8 = arith.constant 0 : index
    %c0_9 = arith.constant 0 : index
    %38 = vector.load %arg1[%c0_8, %c0_9] : memref<8x72xf32, #tpu.memory_space<vmem>>, vector<8x72xf32>
    %cst_10 = arith.constant dense<0.000000e+00> : vector<8x384xf32>
    %39 = tpu.matmul %38, %37, %cst_10 {dimension_numbers = #tpu.dot_dimension_numbers<[1], [0], [0], [1], [0, 0, 1, 1], [], []>} : vector<8x72xf32>, vector<72x384xf32>, vector<8x384xf32> -> vector<8x384xf32>
    %40 = vector.broadcast %2 : vector<1x384xf32> to vector<8x384xf32>
    %41 = arith.mulf %39, %40 : vector<8x384xf32>
    %c0_11 = arith.constant 0 : index
    %c0_12 = arith.constant 0 : index
    %c0_13 = arith.constant 0 : index
    %42 = vector.load %arg6[%c0_11, %c0_12, %c0_13] : memref<1x8x384xf32, #tpu.memory_space<vmem>>, vector<1x8x384xf32>
    %43 = vector.shape_cast %42 : vector<1x8x384xf32> to vector<8x384xf32>
    %44 = vector.shape_cast %41 : vector<8x384xf32> to vector<1x8x384xf32>
    tpu.vector_store %arg6[%c0_11, %c0_12, %c0_13], %44 {strides = array<i32>} : memref<1x8x384xf32, #tpu.memory_space<vmem>>, vector<1x8x384xf32>,
    %cst_14 = arith.constant dense<0.000000e+00> : vector<8xf32>
    %45 = vector.multi_reduction <add>, %41, %cst_14 [1] : vector<8x384xf32> to vector<8xf32>
    %46 = vector.shape_cast %45 : vector<8xf32> to vector<8x1xf32>
    %47 = arith.mulf %41, %41 : vector<8x384xf32>
    %cst_15 = arith.constant dense<0.000000e+00> : vector<8xf32>
    %48 = vector.multi_reduction <add>, %47, %cst_15 [1] : vector<8x384xf32> to vector<8xf32>
    %49 = vector.shape_cast %48 : vector<8xf32> to vector<8x1xf32>
    %50 = tpu.concatenate %46, %49 in 1 : vector<8x1xf32>, vector<8x1xf32> -> vector<8x2xf32>
    %c0_16 = arith.constant 0 : index
    %c0_17 = arith.constant 0 : index
    %c0_18 = arith.constant 0 : index
    %51 = vector.load %arg7[%c0_16, %c0_17, %c0_18] : memref<1x8x2xf32, #tpu.memory_space<vmem>>, vector<1x8x2xf32>
    %52 = vector.shape_cast %51 : vector<1x8x2xf32> to vector<8x2xf32>
    %53 = vector.shape_cast %50 : vector<8x2xf32> to vector<1x8x2xf32>
    tpu.vector_store %arg7[%c0_16, %c0_17, %c0_18], %53 {strides = array<i32>} : memref<1x8x2xf32, #tpu.memory_space<vmem>>, vector<1x8x2xf32>,
    return
  }
  func.func @transform_0(%arg0: i32) -> (i32, i32) {
    %c0_i32 = arith.constant 0 : i32
    %c0_i32_0 = arith.constant 0 : i32
    %c0_i32_1 = arith.constant 0 : i32
    return %c0_i32, %c0_i32_0 : i32, i32
  }
  func.func @transform_1(%arg0: i32) -> (i32, i32) {
    %c0_i32 = arith.constant 0 : i32
    %c0_i32_0 = arith.constant 0 : i32
    %c0_i32_1 = arith.constant 0 : i32
    return %c0_i32, %c0_i32_0 : i32, i32
  }
  func.func @transform_2(%arg0: i32) -> (i32, i32) {
    %c0_i32 = arith.constant 0 : i32
    %c0_i32_0 = arith.constant 0 : i32
    %c0_i32_1 = arith.constant 0 : i32
    return %c0_i32, %c0_i32_0 : i32, i32
  }
  func.func @transform_3(%arg0: i32) -> (i32, i32) {
    %c0_i32 = arith.constant 0 : i32
    %c0_i32_0 = arith.constant 0 : i32
    %c0_i32_1 = arith.constant 0 : i32
    return %c0_i32, %c0_i32_0 : i32, i32
  }
  func.func @transform_4(%arg0: i32) -> (i32, i32, i32) {
    %c0_i32 = arith.constant 0 : i32
    %c0_i32_0 = arith.constant 0 : i32
    %c0_i32_1 = arith.constant 0 : i32
    return %arg0, %c0_i32, %c0_i32_0 : i32, i32, i32
  }
  func.func @transform_5(%arg0: i32) -> (i32, i32, i32) {
    %c0_i32 = arith.constant 0 : i32
    %c0_i32_0 = arith.constant 0 : i32
    %c0_i32_1 = arith.constant 0 : i32
    return %arg0, %c0_i32, %c0_i32_0 : i32, i32, i32
  }
  func.func @transform_6(%arg0: i32) -> (i32, i32, i32) {
    %c0_i32 = arith.constant 0 : i32
    %c0_i32_0 = arith.constant 0 : i32
    %c0_i32_1 = arith.constant 0 : i32
    return %arg0, %c0_i32, %c0_i32_0 : i32, i32, i32
  }
}

</mosaic_0001>

<llo_original>
// kernel: neg.4
$region0: #{neg.4}
  #allocation0 [shape = 's32[1]{0}', space=sflag, size = 0x4, scoped, tag = 'scoped memory for neg.4']
  %s0 = inlined_call_operand.vmem [shape: f32[4,9,4], index: 0, kind: input, shape index: {}]
  %s1 = inlined_call_operand.vmem [shape: f32[4,9,4], index: 1, kind: output, shape index: {}]
  %v2 = vld [vmem:[%s0] sm:$0xf]
  %3 = xla_tuple %v2
  %4 = xla_tuple %3
  %v5 = vxor.u32 %v2, 2147483648
  %6 = xla_tuple %v5
  %7 = vst [vmem:[%s1] sm:$0xf] %v5
  %s8 = scalar_lea.vmem %s0, 4
  %v9 = vld [vmem:[%s8] sm:$0xf]
  %10 = xla_tuple %v9
  %11 = xla_tuple %10
  %v12 = vxor.u32 %v9, 2147483648
  %13 = xla_tuple %v12
  %s14 = scalar_lea.vmem %s1, 4
  %15 = vst [vmem:[%s14] sm:$0xf] %v12
  %s16 = scalar_lea.vmem %s0, 8
  %v17 = vld [vmem:[%s16] sm:$0xf]
  %18 = xla_tuple %v17
  %19 = xla_tuple %18
  %v20 = vxor.u32 %v17, 2147483648
  %21 = xla_tuple %v20
  %s22 = scalar_lea.vmem %s1, 8
  %23 = vst [vmem:[%s22] sm:$0xf] %v20
  %s24 = scalar_lea.vmem %s0, 12
  %v25 = vld [vmem:[%s24] sm:$0xf]
  %26 = xla_tuple %v25
  %27 = xla_tuple %26
  %v28 = vxor.u32 %v25, 2147483648
  %29 = xla_tuple %v28
  %s30 = scalar_lea.vmem %s1, 12
  %31 = vst [vmem:[%s30] sm:$0xf] %v28

// kernel: custom-call
$region0: #{custom-call}
  %s0 = inlined_call_operand.hbm [shape: c64[2,4,16,16], index: 0, kind: input, shape index: {}]
  %s1 = inlined_call_operand.vmem [shape: f32[2,4,16,16], index: 1, kind: output, shape index: {}]
  $region1: #{custom-call} parent=0
    #allocation0 [shape = 's32[1]{0}', space=sflag, size = 0x4, scoped, tag = 'scoped memory for custom-call']
    %2 = vsyncpa [#allocation0], 0
    %s4 = sshll.u32 %s0, 4
    %s5 = int_to_ptr.hbm [resolvable:$true] %s4
    %s6 = sshll.u32 %s1, 4
    %s7 = int_to_ptr.vmem [resolvable:$true] %s6
    %9 = dma.hbm_to_vmem [thread:$0]  %s5, 2048, %s7, [#allocation0]
    %11 = dma.done [#allocation0], 2048
    %12 = vsyncpa [#allocation0], 1

// kernel: custom-call.1
$region0: #{custom-call.1}
  %s0 = inlined_call_operand.hbm [shape: c64[2,4,16,16], index: 0, kind: input, shape index: {}]
  %s1 = inlined_call_operand.vmem [shape: f32[2,4,16,16], index: 1, kind: output, shape index: {}]
  %s2 = scalar_lea.hbm %s0, 128
  $region1: #{custom-call.1} parent=0
    #allocation0 [shape = 's32[1]{0}', space=sflag, size = 0x4, scoped, tag = 'scoped memory for custom-call.1']
    %3 = vsyncpa [#allocation0], 0
    %s5 = sshll.u32 %s2, 4
    %s6 = int_to_ptr.hbm [resolvable:$true] %s5
    %s7 = sshll.u32 %s1, 4
    %s8 = int_to_ptr.vmem [resolvable:$true] %s7
    %10 = dma.hbm_to_vmem [thread:$0]  %s6, 2048, %s8, [#allocation0]
    %12 = dma.done [#allocation0], 2048
    %13 = vsyncpa [#allocation0], 1

// kernel: custom-call.2
$region0: #{custom-call.2}
  %s0 = inlined_call_operand.vmem [shape: f32[2,4,16,16], index: 0, kind: input, shape index: {}]
  %s1 = inlined_call_operand.vmem [shape: f32[2,4,16,16], index: 1, kind: input, shape index: {}]
  %s2 = inlined_call_operand.hbm [shape: c64[2,4,16,16], index: 2, kind: output, shape index: {}]
  %s3 = scalar_lea.hbm %s2, 128
  $region1: #{custom-call.2} parent=0
    #allocation0 [shape = 's32[1]{0}', space=sflag, size = 0x4, scoped, tag = 'scoped memory for custom-call.2']
    %4 = vsyncpa [#allocation0], 0
    %s6 = sshll.u32 %s0, 4
    %s7 = int_to_ptr.vmem [resolvable:$true] %s6
    %s8 = sshll.u32 %s2, 4
    %s9 = int_to_ptr.hbm [resolvable:$true] %s8
    %11 = dma.vmem_to_hbm [thread:$0]  %s7, 2048, %s9, [#allocation0]
    %13 = dma.done [#allocation0], 2048
    %14 = vsyncpa [#allocation0], 1
  $region2: #{custom-call.2} parent=0
    #allocation1 [shape = 's32[1]{0}', space=sflag, size = 0x4, scoped, tag = 'scoped memory for custom-call.2']
    %15 = vsyncpa [#allocation1], 0
    %s17 = sshll.u32 %s1, 4
    %s18 = int_to_ptr.vmem [resolvable:$true] %s17
    %s19 = sshll.u32 %s3, 4
    %s20 = int_to_ptr.hbm [resolvable:$true] %s19
    %22 = dma.vmem_to_hbm [thread:$0]  %s18, 2048, %s20, [#allocation1]
    %24 = dma.done [#allocation1], 2048
    %25 = vsyncpa [#allocation1], 1

// kernel: residual_block_forward.5
$region0: #{residual_block_forward.5}
  #allocation0 [shape = 'u32[]', space=smem, size = 0x4, offset = 0x4, fixed_abs, tag = 'smem constant byte address 0x4 - core index']
  #allocation1 [shape = 'u32[72,128]{1,0:T(1,128)}', space=vmem, size = 0x9000, scoped, tag = 'internal scratch']
  %s0 = inlined_call_operand.vmem [shape: f32[8,1], index: 0, kind: input, shape index: {}]
  %s1 = inlined_call_operand.vmem [shape: f32[8,1], index: 1, kind: input, shape index: {}]
  %s2 = inlined_call_operand.vmem [shape: f32[1,384], index: 2, kind: input, shape index: {}]
  %s3 = inlined_call_operand.vmem [shape: f32[2,8,384], index: 3, kind: input, shape index: {}]
  %s4 = inlined_call_operand.vmem [shape: f32[2,8,384], index: 4, kind: input, shape index: {}]
  %s5 = inlined_call_operand.vmem [shape: f32[2,8,384], index: 5, kind: output, shape index: {}]
  %s6 = sld [smem:[#allocation0]]
  $region53: #{residual_block_forward.5} parent=0
    _
  %s8 = ssub.s32 1, %s6
  %s9 = scalar_select 0, %s8, %s6
  loop: start=0, step=1, limit=4
  $region2: #{residual_block_forward.5} parent=0 // loop_pre_header
    _
  $region3: #{residual_block_forward.5} parent=0 // loop_header
    %s11 = sphi 0, %s15
    %p12 = scmp.ge.s32.totalorder %s11, 4
    %s19 = sphi 0, %s19
    %s21 = sphi 0, %s19
    %s22 = sphi 0, %s21
    %s36 = sphi 0, %s22
    %s40 = sphi 0, %s40
    %s42 = sphi 0, %s40
    %s43 = sphi 0, %s42
    %s57 = sphi 0, %s43
    %s61 = sphi 0, %s61
    %s63 = sphi 0, %s61
    %s64 = sphi 0, %s63
    %s78 = sphi 0, %s64
    %s84 = sphi 0, %s86
    %s87 = sphi 0, %s84
    %s88 = sphi 0, %s87
    %s104 = sphi 0, %s88
    %s110 = sphi 0, %s112
    %s113 = sphi 0, %s110
    %s114 = sphi 0, %s113
    %s130 = sphi 0, %s114
    %s136 = sphi 0, %s138
    %s139 = sphi 0, %s136
    %s140 = sphi 0, %s139
    %s156 = sphi 0, %s140
  $region4: #{residual_block_forward.5} parent=0 // loop_header_branch
    %14 = sbr.rel (%p12) target = $region8
  $region5: #{residual_block_forward.5} parent=0 // loop_body
    %s16 = ssub.s32 %s11, 1
    %s17 = ssub.s32 %s11, 2
    %s18 = sadd.s32 %s11, 1
    %s20 = sadd.s32 %s19, 1
    %p23 = scmp.eq.s32.totalorder %s11, 1
    %p24 = scmp.ne.s32.totalorder %s19, %s21
    %p25 = scmp.eq.s32.totalorder %s11, 0
    %p26 = por %p24, %p25
    %p27 = scmp.ne.s32.totalorder %s19, %s21
    %p28 = scmp.eq.s32.totalorder %s16, 1
    %p29 = por %p27, %p28
    %p30 = scmp.ne.s32.totalorder %s21, %s22
    %p31 = scmp.eq.s32.totalorder %s16, 0
    %p32 = por %p30, %p31
    %p33 = scmp.ne.s32.totalorder %s21, %s22
    %p34 = scmp.eq.s32.totalorder %s17, 1
    %p35 = por %p33, %p34
    %p37 = scmp.ne.s32.totalorder %s22, %s36
    %p38 = scmp.eq.s32.totalorder %s17, 0
    %p39 = por %p37, %p38
    %s41 = sadd.s32 %s40, 1
    %p44 = scmp.eq.s32.totalorder %s11, 1
    %p45 = scmp.ne.s32.totalorder %s40, %s42
    %p46 = scmp.eq.s32.totalorder %s11, 0
    %p47 = por %p45, %p46
    %p48 = scmp.ne.s32.totalorder %s40, %s42
    %p49 = scmp.eq.s32.totalorder %s16, 1
    %p50 = por %p48, %p49
    %p51 = scmp.ne.s32.totalorder %s42, %s43
    %p52 = scmp.eq.s32.totalorder %s16, 0
    %p53 = por %p51, %p52
    %p54 = scmp.ne.s32.totalorder %s42, %s43
    %p55 = scmp.eq.s32.totalorder %s17, 1
    %p56 = por %p54, %p55
    %p58 = scmp.ne.s32.totalorder %s43, %s57
    %p59 = scmp.eq.s32.totalorder %s17, 0
    %p60 = por %p58, %p59
    %s62 = sadd.s32 %s61, 1
    %p65 = scmp.eq.s32.totalorder %s11, 1
    %p66 = scmp.ne.s32.totalorder %s61, %s63
    %p67 = scmp.eq.s32.totalorder %s11, 0
    %p68 = por %p66, %p67
    %p69 = scmp.ne.s32.totalorder %s61, %s63
    %p70 = scmp.eq.s32.totalorder %s16, 1
    %p71 = por %p69, %p70
    %p72 = scmp.ne.s32.totalorder %s63, %s64
    %p73 = scmp.eq.s32.totalorder %s16, 0
    %p74 = por %p72, %p73
    %p75 = scmp.ne.s32.totalorder %s63, %s64
    %p76 = scmp.eq.s32.totalorder %s17, 1
    %p77 = por %p75, %p76
    %p79 = scmp.ne.s32.totalorder %s64, %s78
    %p80 = scmp.eq.s32.totalorder %s17, 0
    %p81 = por %p79, %p80
    %s82 = ssub.s32 %s11, %s18
    %p83 = scmp.eq.s32.totalorder %s82, 0
    %s85 = sadd.s32 %s84, 1
    %s86 = scalar_select %p83, %s84, %s85
    %p89 = pneg %p83
    %p90 = scmp.eq.s32.totalorder %s11, 1
    %p91 = por %p89, %p90
    %p92 = scmp.ne.s32.totalorder %s84, %s87
    %p93 = scmp.eq.s32.totalorder %s11, 0
    %p94 = por %p92, %p93
    %p95 = scmp.ne.s32.totalorder %s84, %s87
    %p96 = scmp.eq.s32.totalorder %s16, 1
    %p97 = por %p95, %p96
    %p98 = scmp.ne.s32.totalorder %s87, %s88
    %p99 = scmp.eq.s32.totalorder %s16, 0
    %p100 = por %p98, %p99
    %p101 = scmp.ne.s32.totalorder %s87, %s88
    %p102 = scmp.eq.s32.totalorder %s17, 1
    %p103 = por %p101, %p102
    %p105 = scmp.ne.s32.totalorder %s88, %s104
    %p106 = scmp.eq.s32.totalorder %s17, 0
    %p107 = por %p105, %p106
    %s108 = ssub.s32 %s11, %s18
    %p109 = scmp.eq.s32.totalorder %s108, 0
    %s111 = sadd.s32 %s110, 1
    %s112 = scalar_select %p109, %s110, %s111
    %p115 = pneg %p109
    %p116 = scmp.eq.s32.totalorder %s11, 1
    %p117 = por %p115, %p116
    %p118 = scmp.ne.s32.totalorder %s110, %s113
    %p119 = scmp.eq.s32.totalorder %s11, 0
    %p120 = por %p118, %p119
    %p121 = scmp.ne.s32.totalorder %s110, %s113
    %p122 = scmp.eq.s32.totalorder %s16, 1
    %p123 = por %p121, %p122
    %p124 = scmp.ne.s32.totalorder %s113, %s114
    %p125 = scmp.eq.s32.totalorder %s16, 0
    %p126 = por %p124, %p125
    %p127 = scmp.ne.s32.totalorder %s113, %s114
    %p128 = scmp.eq.s32.totalorder %s17, 1
    %p129 = por %p127, %p128
    %p131 = scmp.ne.s32.totalorder %s114, %s130
    %p132 = scmp.eq.s32.totalorder %s17, 0
    %p133 = por %p131, %p132
    %s134 = ssub.s32 %s11, %s18
    %p135 = scmp.eq.s32.totalorder %s134, 0
    %s137 = sadd.s32 %s136, 1
    %s138 = scalar_select %p135, %s136, %s137
    %p141 = pneg %p135
    %p142 = scmp.eq.s32.totalorder %s11, 1
    %p143 = por %p141, %p142
    %p144 = scmp.ne.s32.totalorder %s136, %s139
    %p145 = scmp.eq.s32.totalorder %s11, 0
    %p146 = por %p144, %p145
    %p147 = scmp.ne.s32.totalorder %s136, %s139
    %p148 = scmp.eq.s32.totalorder %s16, 1
    %p149 = por %p147, %p148
    %p150 = scmp.ne.s32.totalorder %s139, %s140
    %p151 = scmp.eq.s32.totalorder %s16, 0
    %p152 = por %p150, %p151
    %p153 = scmp.ne.s32.totalorder %s139, %s140
    %p154 = scmp.eq.s32.totalorder %s17, 1
    %p155 = por %p153, %p154
    %p157 = scmp.ne.s32.totalorder %s140, %s156
    %p158 = scmp.eq.s32.totalorder %s17, 0
    %p159 = por %p157, %p158
    %p160 = scmp.le.s32.totalorder 1, %s11
    %p161 = scmp.lt.s32.totalorder %s11, 3
    %p162 = pnand %p160, %p161
    %p163 = pneg %p162
    // Predicated region
    $region9: #{residual_block_forward.5} parent=5 // pred_check
      _
    $region10: #{residual_block_forward.5} parent=5 // pred_check_branch
      %165 = sbr.rel (%p162) target = $region12
    $region11: #{residual_block_forward.5} parent=5 // pred_region
      %s166 = ssub.s32 %s11, 1
      // Predicated region
      $region13: #{residual_block_forward.5} parent=11 // pred_check
        %p167 = pneg %p32
      $region14: #{residual_block_forward.5} parent=11 // pred_check_branch
        %169 = sbr.rel (%p167) target = $region16
      $region15: #{residual_block_forward.5} parent=11 // pred_region
        _
      $region16: #{residual_block_forward.5} parent=11 // pred_fallthru
        _
      // Predicated region
      $region17: #{residual_block_forward.5} parent=11 // pred_check
        %p170 = pneg %p53
      $region18: #{residual_block_forward.5} parent=11 // pred_check_branch
        %172 = sbr.rel (%p170) target = $region20
      $region19: #{residual_block_forward.5} parent=11 // pred_region
        _
      $region20: #{residual_block_forward.5} parent=11 // pred_fallthru
        _
      // Predicated region
      $region21: #{residual_block_forward.5} parent=11 // pred_check
        %p173 = pneg %p74
      $region22: #{residual_block_forward.5} parent=11 // pred_check_branch
        %175 = sbr.rel (%p173) target = $region24
      $region23: #{residual_block_forward.5} parent=11 // pred_region
        _
      $region24: #{residual_block_forward.5} parent=11 // pred_fallthru
        _
    $region12: #{residual_block_forward.5} parent=5 // pred_fallthru
      _
    %p176 = scmp.lt.s32.totalorder %s11, 2
    // Predicated region
    $region25: #{residual_block_forward.5} parent=5 // pred_check
      %p177 = pneg %p176
    $region26: #{residual_block_forward.5} parent=5 // pred_check_branch
      %179 = sbr.rel (%p177) target = $region28
    $region27: #{residual_block_forward.5} parent=5 // pred_region
      // Predicated region
      $region29: #{residual_block_forward.5} parent=27 // pred_check
        %p180 = pneg %p94
      $region30: #{residual_block_forward.5} parent=27 // pred_check_branch
        %182 = sbr.rel (%p180) target = $region32
      $region31: #{residual_block_forward.5} parent=27 // pred_region
        %p183 = scmp.lt.s32.totalorder %s11, 1
        %s184 = scalar_select %p183, %s11, 1
        %s185 = smul.addr %s184, 3
        %s186 = smul.addr %s185, 8
        %s187 = scalar_lea.vmem %s3, %s186
      $region32: #{residual_block_forward.5} parent=27 // pred_fallthru
        _
      // Predicated region
      $region33: #{residual_block_forward.5} parent=27 // pred_check
        %p188 = pneg %p120
      $region34: #{residual_block_forward.5} parent=27 // pred_check_branch
        %190 = sbr.rel (%p188) target = $region36
      $region35: #{residual_block_forward.5} parent=27 // pred_region
        %p191 = scmp.lt.s32.totalorder %s11, 1
        %s192 = scalar_select %p191, %s11, 1
        %s193 = smul.addr %s192, 3
        %s194 = smul.addr %s193, 8
        %s195 = scalar_lea.vmem %s4, %s194
      $region36: #{residual_block_forward.5} parent=27 // pred_fallthru
        _
    $region28: #{residual_block_forward.5} parent=5 // pred_fallthru
      _
    %p196 = scmp.le.s32.totalorder 1, %s11
    %p197 = scmp.lt.s32.totalorder %s11, 3
    %p198 = pnand %p196, %p197
    %p199 = pneg %p198
    // Predicated region
    $region37: #{residual_block_forward.5} parent=5 // pred_check
      _
    $region38: #{residual_block_forward.5} parent=5 // pred_check_branch
      %201 = sbr.rel (%p198) target = $region40
    $region39: #{residual_block_forward.5} parent=5 // pred_region
      %s202 = ssub.s32 %s11, 1
      %p203 = pneg %p32
      %p204 = pneg %p29
      %p205 = pneg %p53
      %p206 = pneg %p50
      %p207 = pneg %p74
      %p208 = pneg %p71
      %p209 = scmp.lt.s32.totalorder %s16, 1
      %s210 = scalar_select %p209, %s16, 1
      %s211 = smul.addr %s210, 3
      %s212 = smul.addr %s211, 8
      %s213 = scalar_lea.vmem %s3, %s212
      %p214 = pneg %p100
      %p215 = pneg %p97
      %p216 = scmp.lt.s32.totalorder %s16, 1
      %s217 = scalar_select %p216, %s16, 1
      %s218 = smul.addr %s217, 3
      %s219 = smul.addr %s218, 8
      %s220 = scalar_lea.vmem %s4, %s219
      %p221 = pneg %p126
      %p222 = pneg %p123
      %p223 = pneg %p152
      %p224 = pneg %p149
      %p225 = scmp.lt.s32.totalorder %s16, 1
      %s226 = scalar_select %p225, %s16, 1
      %s227 = smul.addr %s226, 3
      %s228 = smul.addr %s227, 8
      %s229 = scalar_lea.vmem %s5, %s228
      %p230 = scmp.lt.s32.totalorder %s16, 1
      %s231 = scalar_select %p230, %s16, 1
      %s232 = smul.addr %s231, 3
      %s233 = smul.addr %s232, 8
      %s234 = scalar_lea.vmem %s3, %s233
      %p235 = scmp.lt.s32.totalorder %s16, 1
      %s236 = scalar_select %p235, %s16, 1
      %s237 = smul.addr %s236, 3
      %s238 = smul.addr %s237, 8
      %s239 = scalar_lea.vmem %s4, %s238
      %p240 = scmp.lt.s32.totalorder %s16, 1
      %s241 = scalar_select %p240, %s16, 1
      %s242 = smul.addr %s241, 3
      %s243 = smul.addr %s242, 8
      %s244 = scalar_lea.vmem %s5, %s243
      %v245 = vld [vmem:[%s234] sm:$0xff]
      %v246 = vld [vmem:[%s234 + $0x8] sm:$0xff]
      %v247 = vld [vmem:[%s234 + $0x10] sm:$0xff]
      %v248 = vld [vmem:[%s0] sm:$0xff]
      %250 = vset.pattern.permute.xlu0 0
      %251 = vperm.xlu0 %250, %v248
      %v252 = vpop.permute.xlu0 %251
      %v254 = vmul.f32 %v245, %v252
      %v255 = vmul.f32 %v246, %v252
      %v256 = vmul.f32 %v247, %v252
      %v257 = vld [vmem:[%s1] sm:$0xff]
      %259 = vset.pattern.permute.xlu0 0
      %260 = vperm.xlu0 %259, %v257
      %v261 = vpop.permute.xlu0 %260
      %v263 = vadd.f32 %v254, %v261
      %v264 = vadd.f32 %v255, %v261
      %v265 = vadd.f32 %v256, %v261
      %v266 = vld [vmem:[%s239] sm:$0xff]
      %v267 = vld [vmem:[%s239 + $0x8] sm:$0xff]
      %v268 = vld [vmem:[%s239 + $0x10] sm:$0xff]
      %v269 = vadd.f32 %v263, %v266
      %v270 = vadd.f32 %v264, %v267
      %v271 = vadd.f32 %v265, %v268
      %v272 = vmax.f32 %v269, 0.0
      %v273 = vmax.f32 %v270, 0.0
      %v274 = vmax.f32 %v271, 0.0
      %v275 = vld [vmem:[%s2] sm:$0x7]
      %v277 = vperm.slane %v275, 0
      %v278 = vperm.slane %v275, 1
      %v279 = vperm.slane %v275, 2
      %v283 = vmul.f32 %v272, %v277
      %v284 = vmul.f32 %v273, %v278
      %v285 = vmul.f32 %v274, %v279
      %286 = vst [vmem:[%s244] sm:$0xff] %v283
      %287 = vst [vmem:[%s244 + $0x8] sm:$0xff] %v284
      %288 = vst [vmem:[%s244 + $0x10] sm:$0xff] %v285
      %p289 = scmp.lt.s32.totalorder %s16, 1
      %s290 = scalar_select %p289, %s16, 1
      %s291 = smul.addr %s290, 3
      %s292 = smul.addr %s291, 8
      %s293 = scalar_lea.vmem %s5, %s292
      // Predicated region
      $region41: #{residual_block_forward.5} parent=39 // pred_check
        %p294 = pneg %p149
      $region42: #{residual_block_forward.5} parent=39 // pred_check_branch
        %296 = sbr.rel (%p294) target = $region44
      $region43: #{residual_block_forward.5} parent=39 // pred_region
        _
      $region44: #{residual_block_forward.5} parent=39 // pred_fallthru
        _
    $region40: #{residual_block_forward.5} parent=5 // pred_fallthru
      _
    %p297 = scmp.le.s32.totalorder 2, %s11
    // Predicated region
    $region45: #{residual_block_forward.5} parent=5 // pred_check
      %p298 = pneg %p297
    $region46: #{residual_block_forward.5} parent=5 // pred_check_branch
      %300 = sbr.rel (%p298) target = $region48
    $region47: #{residual_block_forward.5} parent=5 // pred_region
      %s301 = ssub.s32 %s11, 2
      // Predicated region
      $region49: #{residual_block_forward.5} parent=47 // pred_check
        %p302 = pneg %p155
      $region50: #{residual_block_forward.5} parent=47 // pred_check_branch
        %304 = sbr.rel (%p302) target = $region52
      $region51: #{residual_block_forward.5} parent=47 // pred_region
        %p305 = scmp.lt.s32.totalorder %s17, 1
        %s306 = scalar_select %p305, %s17, 1
        %s307 = smul.addr %s306, 3
        %s308 = smul.addr %s307, 8
        %s309 = scalar_lea.vmem %s5, %s308
      $region52: #{residual_block_forward.5} parent=47 // pred_fallthru
        _
    $region48: #{residual_block_forward.5} parent=5 // pred_fallthru
      _
  $region6: #{residual_block_forward.5} parent=0 // loop_footer
    %s15 = sadd.s32 1, %s11
  $region7: #{residual_block_forward.5} parent=0 // loop_footer_branch
    %10 = sbr.rel target = $region3
  $region8: #{residual_block_forward.5} parent=0 // loop_exit
    _

// kernel: residual_block_forward.3
$region0: #{residual_block_forward.3}
  #allocation0 [shape = 'u32[]', space=smem, size = 0x4, offset = 0x4, fixed_abs, tag = 'smem constant byte address 0x4 - core index']
  #allocation1 [shape = 'u32[72,128]{1,0:T(1,128)}', space=vmem, size = 0x9000, scoped, tag = 'internal scratch']
  %s0 = inlined_call_operand.vmem [shape: f32[8,72], index: 0, kind: input, shape index: {}]
  %s1 = inlined_call_operand.vmem [shape: f32[8,1], index: 1, kind: input, shape index: {}]
  %s2 = inlined_call_operand.vmem [shape: f32[8,1], index: 2, kind: input, shape index: {}]
  %s3 = inlined_call_operand.vmem [shape: f32[1,384], index: 3, kind: input, shape index: {}]
  %s4 = inlined_call_operand.vmem [shape: f32[2,8,384], index: 4, kind: input, shape index: {}]
  %s5 = inlined_call_operand.vmem [shape: f32[2,8,384], index: 5, kind: output, shape index: {0}]
  %s6 = inlined_call_operand.vmem [shape: f32[2,8,2], index: 6, kind: output, shape index: {1}]
  %7 = xla_tuple %s5, %s6
  %s8 = sld [smem:[#allocation0]]
  $region61: #{residual_block_forward.3} parent=0
    _
  %s10 = ssub.s32 1, %s8
  %s11 = scalar_select 0, %s10, %s8
  loop: start=0, step=1, limit=4
  $region2: #{residual_block_forward.3} parent=0 // loop_pre_header
    _
  $region3: #{residual_block_forward.3} parent=0 // loop_header
    %s13 = sphi 0, %s17
    %p14 = scmp.ge.s32.totalorder %s13, 4
    %s21 = sphi 0, %s21
    %s23 = sphi 0, %s21
    %s24 = sphi 0, %s23
    %s38 = sphi 0, %s24
    %s42 = sphi 0, %s42
    %s44 = sphi 0, %s42
    %s45 = sphi 0, %s44
    %s59 = sphi 0, %s45
    %s63 = sphi 0, %s63
    %s65 = sphi 0, %s63
    %s66 = sphi 0, %s65
    %s80 = sphi 0, %s66
    %s84 = sphi 0, %s84
    %s86 = sphi 0, %s84
    %s87 = sphi 0, %s86
    %s101 = sphi 0, %s87
    %s107 = sphi 0, %s109
    %s110 = sphi 0, %s107
    %s111 = sphi 0, %s110
    %s127 = sphi 0, %s111
    %s133 = sphi 0, %s135
    %s136 = sphi 0, %s133
    %s137 = sphi 0, %s136
    %s153 = sphi 0, %s137
    %s159 = sphi 0, %s161
    %s162 = sphi 0, %s159
    %s163 = sphi 0, %s162
    %s179 = sphi 0, %s163
  $region4: #{residual_block_forward.3} parent=0 // loop_header_branch
    %16 = sbr.rel (%p14) target = $region8
  $region5: #{residual_block_forward.3} parent=0 // loop_body
    %s18 = ssub.s32 %s13, 1
    %s19 = ssub.s32 %s13, 2
    %s20 = sadd.s32 %s13, 1
    %s22 = sadd.s32 %s21, 1
    %p25 = scmp.eq.s32.totalorder %s13, 1
    %p26 = scmp.ne.s32.totalorder %s21, %s23
    %p27 = scmp.eq.s32.totalorder %s13, 0
    %p28 = por %p26, %p27
    %p29 = scmp.ne.s32.totalorder %s21, %s23
    %p30 = scmp.eq.s32.totalorder %s18, 1
    %p31 = por %p29, %p30
    %p32 = scmp.ne.s32.totalorder %s23, %s24
    %p33 = scmp.eq.s32.totalorder %s18, 0
    %p34 = por %p32, %p33
    %p35 = scmp.ne.s32.totalorder %s23, %s24
    %p36 = scmp.eq.s32.totalorder %s19, 1
    %p37 = por %p35, %p36
    %p39 = scmp.ne.s32.totalorder %s24, %s38
    %p40 = scmp.eq.s32.totalorder %s19, 0
    %p41 = por %p39, %p40
    %s43 = sadd.s32 %s42, 1
    %p46 = scmp.eq.s32.totalorder %s13, 1
    %p47 = scmp.ne.s32.totalorder %s42, %s44
    %p48 = scmp.eq.s32.totalorder %s13, 0
    %p49 = por %p47, %p48
    %p50 = scmp.ne.s32.totalorder %s42, %s44
    %p51 = scmp.eq.s32.totalorder %s18, 1
    %p52 = por %p50, %p51
    %p53 = scmp.ne.s32.totalorder %s44, %s45
    %p54 = scmp.eq.s32.totalorder %s18, 0
    %p55 = por %p53, %p54
    %p56 = scmp.ne.s32.totalorder %s44, %s45
    %p57 = scmp.eq.s32.totalorder %s19, 1
    %p58 = por %p56, %p57
    %p60 = scmp.ne.s32.totalorder %s45, %s59
    %p61 = scmp.eq.s32.totalorder %s19, 0
    %p62 = por %p60, %p61
    %s64 = sadd.s32 %s63, 1
    %p67 = scmp.eq.s32.totalorder %s13, 1
    %p68 = scmp.ne.s32.totalorder %s63, %s65
    %p69 = scmp.eq.s32.totalorder %s13, 0
    %p70 = por %p68, %p69
    %p71 = scmp.ne.s32.totalorder %s63, %s65
    %p72 = scmp.eq.s32.totalorder %s18, 1
    %p73 = por %p71, %p72
    %p74 = scmp.ne.s32.totalorder %s65, %s66
    %p75 = scmp.eq.s32.totalorder %s18, 0
    %p76 = por %p74, %p75
    %p77 = scmp.ne.s32.totalorder %s65, %s66
    %p78 = scmp.eq.s32.totalorder %s19, 1
    %p79 = por %p77, %p78
    %p81 = scmp.ne.s32.totalorder %s66, %s80
    %p82 = scmp.eq.s32.totalorder %s19, 0
    %p83 = por %p81, %p82
    %s85 = sadd.s32 %s84, 1
    %p88 = scmp.eq.s32.totalorder %s13, 1
    %p89 = scmp.ne.s32.totalorder %s84, %s86
    %p90 = scmp.eq.s32.totalorder %s13, 0
    %p91 = por %p89, %p90
    %p92 = scmp.ne.s32.totalorder %s84, %s86
    %p93 = scmp.eq.s32.totalorder %s18, 1
    %p94 = por %p92, %p93
    %p95 = scmp.ne.s32.totalorder %s86, %s87
    %p96 = scmp.eq.s32.totalorder %s18, 0
    %p97 = por %p95, %p96
    %p98 = scmp.ne.s32.totalorder %s86, %s87
    %p99 = scmp.eq.s32.totalorder %s19, 1
    %p100 = por %p98, %p99
    %p102 = scmp.ne.s32.totalorder %s87, %s101
    %p103 = scmp.eq.s32.totalorder %s19, 0
    %p104 = por %p102, %p103
    %s105 = ssub.s32 %s13, %s20
    %p106 = scmp.eq.s32.totalorder %s105, 0
    %s108 = sadd.s32 %s107, 1
    %s109 = scalar_select %p106, %s107, %s108
    %p112 = pneg %p106
    %p113 = scmp.eq.s32.totalorder %s13, 1
    %p114 = por %p112, %p113
    %p115 = scmp.ne.s32.totalorder %s107, %s110
    %p116 = scmp.eq.s32.totalorder %s13, 0
    %p117 = por %p115, %p116
    %p118 = scmp.ne.s32.totalorder %s107, %s110
    %p119 = scmp.eq.s32.totalorder %s18, 1
    %p120 = por %p118, %p119
    %p121 = scmp.ne.s32.totalorder %s110, %s111
    %p122 = scmp.eq.s32.totalorder %s18, 0
    %p123 = por %p121, %p122
    %p124 = scmp.ne.s32.totalorder %s110, %s111
    %p125 = scmp.eq.s32.totalorder %s19, 1
    %p126 = por %p124, %p125
    %p128 = scmp.ne.s32.totalorder %s111, %s127
    %p129 = scmp.eq.s32.totalorder %s19, 0
    %p130 = por %p128, %p129
    %s131 = ssub.s32 %s13, %s20
    %p132 = scmp.eq.s32.totalorder %s131, 0
    %s134 = sadd.s32 %s133, 1
    %s135 = scalar_select %p132, %s133, %s134
    %p138 = pneg %p132
    %p139 = scmp.eq.s32.totalorder %s13, 1
    %p140 = por %p138, %p139
    %p141 = scmp.ne.s32.totalorder %s133, %s136
    %p142 = scmp.eq.s32.totalorder %s13, 0
    %p143 = por %p141, %p142
    %p144 = scmp.ne.s32.totalorder %s133, %s136
    %p145 = scmp.eq.s32.totalorder %s18, 1
    %p146 = por %p144, %p145
    %p147 = scmp.ne.s32.totalorder %s136, %s137
    %p148 = scmp.eq.s32.totalorder %s18, 0
    %p149 = por %p147, %p148
    %p150 = scmp.ne.s32.totalorder %s136, %s137
    %p151 = scmp.eq.s32.totalorder %s19, 1
    %p152 = por %p150, %p151
    %p154 = scmp.ne.s32.totalorder %s137, %s153
    %p155 = scmp.eq.s32.totalorder %s19, 0
    %p156 = por %p154, %p155
    %s157 = ssub.s32 %s13, %s20
    %p158 = scmp.eq.s32.totalorder %s157, 0
    %s160 = sadd.s32 %s159, 1
    %s161 = scalar_select %p158, %s159, %s160
    %p164 = pneg %p158
    %p165 = scmp.eq.s32.totalorder %s13, 1
    %p166 = por %p164, %p165
    %p167 = scmp.ne.s32.totalorder %s159, %s162
    %p168 = scmp.eq.s32.totalorder %s13, 0
    %p169 = por %p167, %p168
    %p170 = scmp.ne.s32.totalorder %s159, %s162
    %p171 = scmp.eq.s32.totalorder %s18, 1
    %p172 = por %p170, %p171
    %p173 = scmp.ne.s32.totalorder %s162, %s163
    %p174 = scmp.eq.s32.totalorder %s18, 0
    %p175 = por %p173, %p174
    %p176 = scmp.ne.s32.totalorder %s162, %s163
    %p177 = scmp.eq.s32.totalorder %s19, 1
    %p178 = por %p176, %p177
    %p180 = scmp.ne.s32.totalorder %s163, %s179
    %p181 = scmp.eq.s32.totalorder %s19, 0
    %p182 = por %p180, %p181
    %p183 = scmp.le.s32.totalorder 1, %s13
    %p184 = scmp.lt.s32.totalorder %s13, 3
    %p185 = pnand %p183, %p184
    %p186 = pneg %p185
    // Predicated region
    $region9: #{residual_block_forward.3} parent=5 // pred_check
      _
    $region10: #{residual_block_forward.3} parent=5 // pred_check_branch
      %188 = sbr.rel (%p185) target = $region12
    $region11: #{residual_block_forward.3} parent=5 // pred_region
      %s189 = ssub.s32 %s13, 1
      // Predicated region
      $region13: #{residual_block_forward.3} parent=11 // pred_check
        %p190 = pneg %p34
      $region14: #{residual_block_forward.3} parent=11 // pred_check_branch
        %192 = sbr.rel (%p190) target = $region16
      $region15: #{residual_block_forward.3} parent=11 // pred_region
        _
      $region16: #{residual_block_forward.3} parent=11 // pred_fallthru
        _
      // Predicated region
      $region17: #{residual_block_forward.3} parent=11 // pred_check
        %p193 = pneg %p55
      $region18: #{residual_block_forward.3} parent=11 // pred_check_branch
        %195 = sbr.rel (%p193) target = $region20
      $region19: #{residual_block_forward.3} parent=11 // pred_region
        _
      $region20: #{residual_block_forward.3} parent=11 // pred_fallthru
        _
      // Predicated region
      $region21: #{residual_block_forward.3} parent=11 // pred_check
        %p196 = pneg %p76
      $region22: #{residual_block_forward.3} parent=11 // pred_check_branch
        %198 = sbr.rel (%p196) target = $region24
      $region23: #{residual_block_forward.3} parent=11 // pred_region
        _
      $region24: #{residual_block_forward.3} parent=11 // pred_fallthru
        _
      // Predicated region
      $region25: #{residual_block_forward.3} parent=11 // pred_check
        %p199 = pneg %p97
      $region26: #{residual_block_forward.3} parent=11 // pred_check_branch
        %201 = sbr.rel (%p199) target = $region28
      $region27: #{residual_block_forward.3} parent=11 // pred_region
        _
      $region28: #{residual_block_forward.3} parent=11 // pred_fallthru
        _
    $region12: #{residual_block_forward.3} parent=5 // pred_fallthru
      _
    %p202 = scmp.lt.s32.totalorder %s13, 2
    // Predicated region
    $region29: #{residual_block_forward.3} parent=5 // pred_check
      %p203 = pneg %p202
    $region30: #{residual_block_forward.3} parent=5 // pred_check_branch
      %205 = sbr.rel (%p203) target = $region32
    $region31: #{residual_block_forward.3} parent=5 // pred_region
      // Predicated region
      $region33: #{residual_block_forward.3} parent=31 // pred_check
        %p206 = pneg %p117
      $region34: #{residual_block_forward.3} parent=31 // pred_check_branch
        %208 = sbr.rel (%p206) target = $region36
      $region35: #{residual_block_forward.3} parent=31 // pred_region
        %p209 = scmp.lt.s32.totalorder %s13, 1
        %s210 = scalar_select %p209, %s13, 1
        %s211 = smul.addr %s210, 3
        %s212 = smul.addr %s211, 8
        %s213 = scalar_lea.vmem %s4, %s212
      $region36: #{residual_block_forward.3} parent=31 // pred_fallthru
        _
    $region32: #{residual_block_forward.3} parent=5 // pred_fallthru
      _
    %p214 = scmp.le.s32.totalorder 1, %s13
    %p215 = scmp.lt.s32.totalorder %s13, 3
    %p216 = pnand %p214, %p215
    %p217 = pneg %p216
    // Predicated region
    $region37: #{residual_block_forward.3} parent=5 // pred_check
      _
    $region38: #{residual_block_forward.3} parent=5 // pred_check_branch
      %219 = sbr.rel (%p216) target = $region40
    $region39: #{residual_block_forward.3} parent=5 // pred_region
      %s220 = ssub.s32 %s13, 1
      %p221 = pneg %p34
      %p222 = pneg %p31
      %p223 = pneg %p55
      %p224 = pneg %p52
      %p225 = pneg %p76
      %p226 = pneg %p73
      %p227 = pneg %p97
      %p228 = pneg %p94
      %p229 = scmp.lt.s32.totalorder %s18, 1
      %s230 = scalar_select %p229, %s18, 1
      %s231 = smul.addr %s230, 3
      %s232 = smul.addr %s231, 8
      %s233 = scalar_lea.vmem %s4, %s232
      %p234 = pneg %p123
      %p235 = pneg %p120
      %p236 = pneg %p149
      %p237 = pneg %p146
      %p238 = scmp.lt.s32.totalorder %s18, 1
      %s239 = scalar_select %p238, %s18, 1
      %s240 = smul.addr %s239, 3
      %s241 = smul.addr %s240, 8
      %s242 = scalar_lea.vmem %s5, %s241
      %p243 = pneg %p175
      %p244 = pneg %p172
      %p245 = scmp.lt.s32.totalorder %s18, 1
      %s246 = scalar_select %p245, %s18, 1
      %s247 = smul.addr %s246, 8
      %s248 = scalar_lea.vmem %s6, %s247
      %p249 = scmp.lt.s32.totalorder %s18, 1
      %s250 = scalar_select %p249, %s18, 1
      %s251 = smul.addr %s250, 3
      %s252 = smul.addr %s251, 8
      %s253 = scalar_lea.vmem %s4, %s252
      %p254 = scmp.lt.s32.totalorder %s18, 1
      %s255 = scalar_select %p254, %s18, 1
      %s256 = smul.addr %s255, 3
      %s257 = smul.addr %s256, 8
      %s258 = scalar_lea.vmem %s5, %s257
      %p259 = scmp.lt.s32.totalorder %s18, 1
      %s260 = scalar_select %p259, %s18, 1
      %s261 = smul.addr %s260, 8
      %s262 = scalar_lea.vmem %s6, %s261
      %v263 = vld [vmem:[%s253] sm:$0xff]
      %v264 = vld [vmem:[%s253 + $0x8] sm:$0xff]
      %v265 = vld [vmem:[%s253 + $0x10] sm:$0xff]
      %v266 = vld [vmem:[%s3] sm:$0x7]
      %268 = vrot.lane.b32.xlu0 %v265, 19
      %v269 = vpop.permute.xlu0 %268
      %273 = vrot.lane.b32.xlu0 %v263, 19
      %v274 = vpop.permute.xlu0 %273
      %275 = vrot.lane.b32.xlu0 %v264, 19
      %v276 = vpop.permute.xlu0 %275
      %vm277 = vcmask 154624
      %v278 = vsel %vm277, %v274, %v276
      %v279 = vsel %vm277, %v276, %v269
      %v283 = vsel %vm277, %v269, %v274
      %284 = vrot.lane.b32.xlu0 %v265, 18
      %v285 = vpop.permute.xlu0 %284
      %287 = vrot.lane.b32.xlu0 %v263, 18
      %v288 = vpop.permute.xlu0 %287
      %289 = vrot.lane.b32.xlu0 %v264, 18
      %v290 = vpop.permute.xlu0 %289
      %vm291 = vcmask 146432
      %v292 = vsel %vm291, %v288, %v290
      %v293 = vsel %vm291, %v290, %v285
      %v297 = vsel %vm291, %v285, %v288
      %298 = vrot.lane.b32.xlu0 %v265, 17
      %v299 = vpop.permute.xlu0 %298
      %301 = vrot.lane.b32.xlu0 %v263, 17
      %v302 = vpop.permute.xlu0 %301
      %303 = vrot.lane.b32.xlu0 %v264, 17
      %v304 = vpop.permute.xlu0 %303
      %vm305 = vcmask 138240
      %v306 = vsel %vm305, %v302, %v304
      %v307 = vsel %vm305, %v304, %v299
      %v311 = vsel %vm305, %v299, %v302
      %312 = vrot.lane.b32.xlu0 %v265, 1
      %v313 = vpop.permute.xlu0 %312
      %315 = vrot.lane.b32.xlu0 %v263, 1
      %v316 = vpop.permute.xlu0 %315
      %317 = vrot.lane.b32.xlu0 %v264, 1
      %v318 = vpop.permute.xlu0 %317
      %vm319 = vcmask 7168
      %v320 = vsel %vm319, %v316, %v318
      %v321 = vsel %vm319, %v318, %v313
      %v325 = vsel %vm319, %v313, %v316
      %326 = vrot.lane.b32.xlu0 %v263, 127
      %v327 = vpop.permute.xlu0 %326
      %328 = vrot.lane.b32.xlu0 %v264, 127
      %v329 = vpop.permute.xlu0 %328
      %330 = vrot.lane.b32.xlu0 %v265, 127
      %v331 = vpop.permute.xlu0 %330
      %vm332 = vcmask 1039360
      %v333 = vsel %vm332, %v327, %v329
      %v334 = vsel %vm332, %v329, %v331
      %v339 = vsel %vm332, %v331, %v327
      %340 = vrot.lane.b32.xlu0 %v263, 111
      %v341 = vpop.permute.xlu0 %340
      %342 = vrot.lane.b32.xlu0 %v264, 111
      %v343 = vpop.permute.xlu0 %342
      %344 = vrot.lane.b32.xlu0 %v265, 111
      %v345 = vpop.permute.xlu0 %344
      %vm346 = vcmask 908288
      %v347 = vsel %vm346, %v341, %v343
      %v348 = vsel %vm346, %v343, %v345
      %v353 = vsel %vm346, %v345, %v341
      %354 = vrot.lane.b32.xlu0 %v263, 110
      %v355 = vpop.permute.xlu0 %354
      %356 = vrot.lane.b32.xlu0 %v264, 110
      %v357 = vpop.permute.xlu0 %356
      %358 = vrot.lane.b32.xlu0 %v265, 110
      %v359 = vpop.permute.xlu0 %358
      %vm360 = vcmask 900096
      %v361 = vsel %vm360, %v355, %v357
      %v362 = vsel %vm360, %v357, %v359
      %v367 = vsel %vm360, %v359, %v355
      %368 = vrot.lane.b32.xlu0 %v263, 109
      %v369 = vpop.permute.xlu0 %368
      %370 = vrot.lane.b32.xlu0 %v264, 109
      %v371 = vpop.permute.xlu0 %370
      %372 = vrot.lane.b32.xlu0 %v265, 109
      %v373 = vpop.permute.xlu0 %372
      %vm374 = vcmask 891904
      %v375 = vsel %vm374, %v369, %v371
      %v376 = vsel %vm374, %v371, %v373
      %v381 = vsel %vm374, %v373, %v369
      %v382 = vld [vmem:[%s0] sm:$0xff]
      %vm383 = vcmask 588800
      %v385 = vsel %vm383, %v382, 0
      %387 = vmatpush.msra.mxu0 0.0
      %388 = vmatpush.msra.mxu0 0.0
      %389 = vmatpush.msra.mxu0 0.0
      %390 = vmatpush.msra.mxu0 0.0
      %391 = vmatpush.msra.mxu0 0.0
      %392 = vmatpush.msra.mxu0 0.0
      %393 = vmatpush.msra.mxu0 0.0
      %394 = vmatpush.msra.mxu0 %v375
      %395 = vmatpush.msra.mxu0 %v361
      %396 = vmatpush.msra.mxu0 %v347
      %397 = vmatpush.msra.mxu0 %v333
      %398 = vmatpush.msra.mxu0 %v263
      %399 = vmatpush.msra.mxu0 %v325
      %400 = vmatpush.msra.mxu0 %v311
      %401 = vmatpush.msra.mxu0 %v297
      %402 = vmatpush.msra.mxu0 %v283
      %403 = vmatmul.f32.gmra.mxu0 %v385
      %v404 = vpop.f32.mrf.mxu0
      %v405 = vadd.f32 0.0, %v404
      %406 = vdwg.mxu0
      %407 = vmatpush.msra.mxu0 0.0
      %408 = vmatpush.msra.mxu0 0.0
      %409 = vmatpush.msra.mxu0 0.0
      %410 = vmatpush.msra.mxu0 0.0
      %411 = vmatpush.msra.mxu0 0.0
      %412 = vmatpush.msra.mxu0 0.0
      %413 = vmatpush.msra.mxu0 0.0
      %414 = vmatpush.msra.mxu0 %v376
      %415 = vmatpush.msra.mxu0 %v362
      %416 = vmatpush.msra.mxu0 %v348
      %417 = vmatpush.msra.mxu0 %v334
      %418 = vmatpush.msra.mxu0 %v264
      %419 = vmatpush.msra.mxu0 %v320
      %420 = vmatpush.msra.mxu0 %v306
      %421 = vmatpush.msra.mxu0 %v292
      %422 = vmatpush.msra.mxu0 %v278
      %423 = vmatmul.f32.gmra.mxu0 %v385
      %v424 = vpop.f32.mrf.mxu0
      %v425 = vadd.f32 0.0, %v424
      %426 = vdwg.mxu0
      %427 = vmatpush.msra.mxu0 0.0
      %428 = vmatpush.msra.mxu0 0.0
      %429 = vmatpush.msra.mxu0 0.0
      %430 = vmatpush.msra.mxu0 0.0
      %431 = vmatpush.msra.mxu0 0.0
      %432 = vmatpush.msra.mxu0 0.0
      %433 = vmatpush.msra.mxu0 0.0
      %434 = vmatpush.msra.mxu0 %v381
      %435 = vmatpush.msra.mxu0 %v367
      %436 = vmatpush.msra.mxu0 %v353
      %437 = vmatpush.msra.mxu0 %v339
      %438 = vmatpush.msra.mxu0 %v265
      %439 = vmatpush.msra.mxu0 %v321
      %440 = vmatpush.msra.mxu0 %v307
      %441 = vmatpush.msra.mxu0 %v293
      %442 = vmatpush.msra.mxu0 %v279
      %443 = vmatmul.f32.gmra.mxu0 %v385
      %v444 = vpop.f32.mrf.mxu0
      %v445 = vadd.f32 0.0, %v444
      %446 = vdwg.mxu0
      %v448 = vperm.slane %v266, 0
      %v449 = vperm.slane %v266, 1
      %v450 = vperm.slane %v266, 2
      %v454 = vmul.f32 %v405, %v448
      %v455 = vmul.f32 %v425, %v449
      %v456 = vmul.f32 %v445, %v450
      %457 = vst [vmem:[%s258] sm:$0xff] %v454
      %458 = vst [vmem:[%s258 + $0x8] sm:$0xff] %v455
      %459 = vst [vmem:[%s258 + $0x10] sm:$0xff] %v456
      %v460 = vadd.f32 %v454, %v455
      %v461 = vadd.f32 %v460, %v456
      %462 = vadd.xlane.f32.xlu0 %v461
      %v463 = vpop.xlane.xlu0 %462
      %v464 = vmul.f32 %v454, %v454
      %v465 = vmul.f32 %v455, %v455
      %v466 = vmul.f32 %v456, %v456
      %v467 = vadd.f32 %v464, %v465
      %v468 = vadd.f32 %v467, %v466
      %469 = vadd.xlane.f32.xlu0 %v468
      %v470 = vpop.xlane.xlu0 %469
      %v471 = vsel %vm319, %v463, %v470
      %vm472 = vcmask 15360
      %473 = vst.msk [vmem:[%s262] sm:$0xff] %vm472, %v471
      %p474 = scmp.lt.s32.totalorder %s18, 1
      %s475 = scalar_select %p474, %s18, 1
      %s476 = smul.addr %s475, 3
      %s477 = smul.addr %s476, 8
      %s478 = scalar_lea.vmem %s5, %s477
      %p479 = scmp.lt.s32.totalorder %s18, 1
      %s480 = scalar_select %p479, %s18, 1
      %s481 = smul.addr %s480, 8
      %s482 = scalar_lea.vmem %s6, %s481
      // Predicated region
      $region41: #{residual_block_forward.3} parent=39 // pred_check
        %p483 = pneg %p146
      $region42: #{residual_block_forward.3} parent=39 // pred_check_branch
        %485 = sbr.rel (%p483) target = $region44
      $region43: #{residual_block_forward.3} parent=39 // pred_region
        _
      $region44: #{residual_block_forward.3} parent=39 // pred_fallthru
        _
      // Predicated region
      $region45: #{residual_block_forward.3} parent=39 // pred_check
        %p486 = pneg %p172
      $region46: #{residual_block_forward.3} parent=39 // pred_check_branch
        %488 = sbr.rel (%p486) target = $region48
      $region47: #{residual_block_forward.3} parent=39 // pred_region
        _
      $region48: #{residual_block_forward.3} parent=39 // pred_fallthru
        _
    $region40: #{residual_block_forward.3} parent=5 // pred_fallthru
      _
    %p489 = scmp.le.s32.totalorder 2, %s13
    // Predicated region
    $region49: #{residual_block_forward.3} parent=5 // pred_check
      %p490 = pneg %p489
    $region50: #{residual_block_forward.3} parent=5 // pred_check_branch
      %492 = sbr.rel (%p490) target = $region52
    $region51: #{residual_block_forward.3} parent=5 // pred_region
      %s493 = ssub.s32 %s13, 2
      // Predicated region
      $region53: #{residual_block_forward.3} parent=51 // pred_check
        %p494 = pneg %p152
      $region54: #{residual_block_forward.3} parent=51 // pred_check_branch
        %496 = sbr.rel (%p494) target = $region56
      $region55: #{residual_block_forward.3} parent=51 // pred_region
        %p497 = scmp.lt.s32.totalorder %s19, 1
        %s498 = scalar_select %p497, %s19, 1
        %s499 = smul.addr %s498, 3
        %s500 = smul.addr %s499, 8
        %s501 = scalar_lea.vmem %s5, %s500
      $region56: #{residual_block_forward.3} parent=51 // pred_fallthru
        _
      // Predicated region
      $region57: #{residual_block_forward.3} parent=51 // pred_check
        %p502 = pneg %p178
      $region58: #{residual_block_forward.3} parent=51 // pred_check_branch
        %504 = sbr.rel (%p502) target = $region60
      $region59: #{residual_block_forward.3} parent=51 // pred_region
        %p505 = scmp.lt.s32.totalorder %s19, 1
        %s506 = scalar_select %p505, %s19, 1
        %s507 = smul.addr %s506, 8
        %s508 = scalar_lea.vmem %s6, %s507
      $region60: #{residual_block_forward.3} parent=51 // pred_fallthru
        _
    $region52: #{residual_block_forward.3} parent=5 // pred_fallthru
      _
  $region6: #{residual_block_forward.3} parent=0 // loop_footer
    %s17 = sadd.s32 1, %s13
  $region7: #{residual_block_forward.3} parent=0 // loop_footer_branch
    %12 = sbr.rel target = $region3
  $region8: #{residual_block_forward.3} parent=0 // loop_exit
    _

// kernel: residual_block_forward.4
$region0: #{residual_block_forward.4}
  #allocation0 [shape = 'u32[]', space=smem, size = 0x4, offset = 0x4, fixed_abs, tag = 'smem constant byte address 0x4 - core index']
  #allocation1 [shape = 'u32[72,128]{1,0:T(1,128)}', space=vmem, size = 0x9000, scoped, tag = 'internal scratch']
  %s0 = inlined_call_operand.vmem [shape: f32[8,72], index: 0, kind: input, shape index: {}]
  %s1 = inlined_call_operand.vmem [shape: f32[8,1], index: 1, kind: input, shape index: {}]
  %s2 = inlined_call_operand.vmem [shape: f32[8,1], index: 2, kind: input, shape index: {}]
  %s3 = inlined_call_operand.vmem [shape: f32[1,384], index: 3, kind: input, shape index: {}]
  %s4 = inlined_call_operand.vmem [shape: f32[2,8,384], index: 4, kind: input, shape index: {}]
  %s5 = inlined_call_operand.vmem [shape: f32[2,8,384], index: 5, kind: output, shape index: {0}]
  %s6 = inlined_call_operand.vmem [shape: f32[2,8,2], index: 6, kind: output, shape index: {1}]
  %7 = xla_tuple %s5, %s6
  %s8 = sld [smem:[#allocation0]]
  $region61: #{residual_block_forward.4} parent=0
    _
  %s10 = ssub.s32 1, %s8
  %s11 = scalar_select 0, %s10, %s8
  loop: start=0, step=1, limit=4
  $region2: #{residual_block_forward.4} parent=0 // loop_pre_header
    _
  $region3: #{residual_block_forward.4} parent=0 // loop_header
    %s13 = sphi 0, %s17
    %p14 = scmp.ge.s32.totalorder %s13, 4
    %s21 = sphi 0, %s21
    %s23 = sphi 0, %s21
    %s24 = sphi 0, %s23
    %s38 = sphi 0, %s24
    %s42 = sphi 0, %s42
    %s44 = sphi 0, %s42
    %s45 = sphi 0, %s44
    %s59 = sphi 0, %s45
    %s63 = sphi 0, %s63
    %s65 = sphi 0, %s63
    %s66 = sphi 0, %s65
    %s80 = sphi 0, %s66
    %s84 = sphi 0, %s84
    %s86 = sphi 0, %s84
    %s87 = sphi 0, %s86
    %s101 = sphi 0, %s87
    %s107 = sphi 0, %s109
    %s110 = sphi 0, %s107
    %s111 = sphi 0, %s110
    %s127 = sphi 0, %s111
    %s133 = sphi 0, %s135
    %s136 = sphi 0, %s133
    %s137 = sphi 0, %s136
    %s153 = sphi 0, %s137
    %s159 = sphi 0, %s161
    %s162 = sphi 0, %s159
    %s163 = sphi 0, %s162
    %s179 = sphi 0, %s163
  $region4: #{residual_block_forward.4} parent=0 // loop_header_branch
    %16 = sbr.rel (%p14) target = $region8
  $region5: #{residual_block_forward.4} parent=0 // loop_body
    %s18 = ssub.s32 %s13, 1
    %s19 = ssub.s32 %s13, 2
    %s20 = sadd.s32 %s13, 1
    %s22 = sadd.s32 %s21, 1
    %p25 = scmp.eq.s32.totalorder %s13, 1
    %p26 = scmp.ne.s32.totalorder %s21, %s23
    %p27 = scmp.eq.s32.totalorder %s13, 0
    %p28 = por %p26, %p27
    %p29 = scmp.ne.s32.totalorder %s21, %s23
    %p30 = scmp.eq.s32.totalorder %s18, 1
    %p31 = por %p29, %p30
    %p32 = scmp.ne.s32.totalorder %s23, %s24
    %p33 = scmp.eq.s32.totalorder %s18, 0
    %p34 = por %p32, %p33
    %p35 = scmp.ne.s32.totalorder %s23, %s24
    %p36 = scmp.eq.s32.totalorder %s19, 1
    %p37 = por %p35, %p36
    %p39 = scmp.ne.s32.totalorder %s24, %s38
    %p40 = scmp.eq.s32.totalorder %s19, 0
    %p41 = por %p39, %p40
    %s43 = sadd.s32 %s42, 1
    %p46 = scmp.eq.s32.totalorder %s13, 1
    %p47 = scmp.ne.s32.totalorder %s42, %s44
    %p48 = scmp.eq.s32.totalorder %s13, 0
    %p49 = por %p47, %p48
    %p50 = scmp.ne.s32.totalorder %s42, %s44
    %p51 = scmp.eq.s32.totalorder %s18, 1
    %p52 = por %p50, %p51
    %p53 = scmp.ne.s32.totalorder %s44, %s45
    %p54 = scmp.eq.s32.totalorder %s18, 0
    %p55 = por %p53, %p54
    %p56 = scmp.ne.s32.totalorder %s44, %s45
    %p57 = scmp.eq.s32.totalorder %s19, 1
    %p58 = por %p56, %p57
    %p60 = scmp.ne.s32.totalorder %s45, %s59
    %p61 = scmp.eq.s32.totalorder %s19, 0
    %p62 = por %p60, %p61
    %s64 = sadd.s32 %s63, 1
    %p67 = scmp.eq.s32.totalorder %s13, 1
    %p68 = scmp.ne.s32.totalorder %s63, %s65
    %p69 = scmp.eq.s32.totalorder %s13, 0
    %p70 = por %p68, %p69
    %p71 = scmp.ne.s32.totalorder %s63, %s65
    %p72 = scmp.eq.s32.totalorder %s18, 1
    %p73 = por %p71, %p72
    %p74 = scmp.ne.s32.totalorder %s65, %s66
    %p75 = scmp.eq.s32.totalorder %s18, 0
    %p76 = por %p74, %p75
    %p77 = scmp.ne.s32.totalorder %s65, %s66
    %p78 = scmp.eq.s32.totalorder %s19, 1
    %p79 = por %p77, %p78
    %p81 = scmp.ne.s32.totalorder %s66, %s80
    %p82 = scmp.eq.s32.totalorder %s19, 0
    %p83 = por %p81, %p82
    %s85 = sadd.s32 %s84, 1
    %p88 = scmp.eq.s32.totalorder %s13, 1
    %p89 = scmp.ne.s32.totalorder %s84, %s86
    %p90 = scmp.eq.s32.totalorder %s13, 0
    %p91 = por %p89, %p90
    %p92 = scmp.ne.s32.totalorder %s84, %s86
    %p93 = scmp.eq.s32.totalorder %s18, 1
    %p94 = por %p92, %p93
    %p95 = scmp.ne.s32.totalorder %s86, %s87
    %p96 = scmp.eq.s32.totalorder %s18, 0
    %p97 = por %p95, %p96
    %p98 = scmp.ne.s32.totalorder %s86, %s87
    %p99 = scmp.eq.s32.totalorder %s19, 1
    %p100 = por %p98, %p99
    %p102 = scmp.ne.s32.totalorder %s87, %s101
    %p103 = scmp.eq.s32.totalorder %s19, 0
    %p104 = por %p102, %p103
    %s105 = ssub.s32 %s13, %s20
    %p106 = scmp.eq.s32.totalorder %s105, 0
    %s108 = sadd.s32 %s107, 1
    %s109 = scalar_select %p106, %s107, %s108
    %p112 = pneg %p106
    %p113 = scmp.eq.s32.totalorder %s13, 1
    %p114 = por %p112, %p113
    %p115 = scmp.ne.s32.totalorder %s107, %s110
    %p116 = scmp.eq.s32.totalorder %s13, 0
    %p117 = por %p115, %p116
    %p118 = scmp.ne.s32.totalorder %s107, %s110
    %p119 = scmp.eq.s32.totalorder %s18, 1
    %p120 = por %p118, %p119
    %p121 = scmp.ne.s32.totalorder %s110, %s111
    %p122 = scmp.eq.s32.totalorder %s18, 0
    %p123 = por %p121, %p122
    %p124 = scmp.ne.s32.totalorder %s110, %s111
    %p125 = scmp.eq.s32.totalorder %s19, 1
    %p126 = por %p124, %p125
    %p128 = scmp.ne.s32.totalorder %s111, %s127
    %p129 = scmp.eq.s32.totalorder %s19, 0
    %p130 = por %p128, %p129
    %s131 = ssub.s32 %s13, %s20
    %p132 = scmp.eq.s32.totalorder %s131, 0
    %s134 = sadd.s32 %s133, 1
    %s135 = scalar_select %p132, %s133, %s134
    %p138 = pneg %p132
    %p139 = scmp.eq.s32.totalorder %s13, 1
    %p140 = por %p138, %p139
    %p141 = scmp.ne.s32.totalorder %s133, %s136
    %p142 = scmp.eq.s32.totalorder %s13, 0
    %p143 = por %p141, %p142
    %p144 = scmp.ne.s32.totalorder %s133, %s136
    %p145 = scmp.eq.s32.totalorder %s18, 1
    %p146 = por %p144, %p145
    %p147 = scmp.ne.s32.totalorder %s136, %s137
    %p148 = scmp.eq.s32.totalorder %s18, 0
    %p149 = por %p147, %p148
    %p150 = scmp.ne.s32.totalorder %s136, %s137
    %p151 = scmp.eq.s32.totalorder %s19, 1
    %p152 = por %p150, %p151
    %p154 = scmp.ne.s32.totalorder %s137, %s153
    %p155 = scmp.eq.s32.totalorder %s19, 0
    %p156 = por %p154, %p155
    %s157 = ssub.s32 %s13, %s20
    %p158 = scmp.eq.s32.totalorder %s157, 0
    %s160 = sadd.s32 %s159, 1
    %s161 = scalar_select %p158, %s159, %s160
    %p164 = pneg %p158
    %p165 = scmp.eq.s32.totalorder %s13, 1
    %p166 = por %p164, %p165
    %p167 = scmp.ne.s32.totalorder %s159, %s162
    %p168 = scmp.eq.s32.totalorder %s13, 0
    %p169 = por %p167, %p168
    %p170 = scmp.ne.s32.totalorder %s159, %s162
    %p171 = scmp.eq.s32.totalorder %s18, 1
    %p172 = por %p170, %p171
    %p173 = scmp.ne.s32.totalorder %s162, %s163
    %p174 = scmp.eq.s32.totalorder %s18, 0
    %p175 = por %p173, %p174
    %p176 = scmp.ne.s32.totalorder %s162, %s163
    %p177 = scmp.eq.s32.totalorder %s19, 1
    %p178 = por %p176, %p177
    %p180 = scmp.ne.s32.totalorder %s163, %s179
    %p181 = scmp.eq.s32.totalorder %s19, 0
    %p182 = por %p180, %p181
    %p183 = scmp.le.s32.totalorder 1, %s13
    %p184 = scmp.lt.s32.totalorder %s13, 3
    %p185 = pnand %p183, %p184
    %p186 = pneg %p185
    // Predicated region
    $region9: #{residual_block_forward.4} parent=5 // pred_check
      _
    $region10: #{residual_block_forward.4} parent=5 // pred_check_branch
      %188 = sbr.rel (%p185) target = $region12
    $region11: #{residual_block_forward.4} parent=5 // pred_region
      %s189 = ssub.s32 %s13, 1
      // Predicated region
      $region13: #{residual_block_forward.4} parent=11 // pred_check
        %p190 = pneg %p34
      $region14: #{residual_block_forward.4} parent=11 // pred_check_branch
        %192 = sbr.rel (%p190) target = $region16
      $region15: #{residual_block_forward.4} parent=11 // pred_region
        _
      $region16: #{residual_block_forward.4} parent=11 // pred_fallthru
        _
      // Predicated region
      $region17: #{residual_block_forward.4} parent=11 // pred_check
        %p193 = pneg %p55
      $region18: #{residual_block_forward.4} parent=11 // pred_check_branch
        %195 = sbr.rel (%p193) target = $region20
      $region19: #{residual_block_forward.4} parent=11 // pred_region
        _
      $region20: #{residual_block_forward.4} parent=11 // pred_fallthru
        _
      // Predicated region
      $region21: #{residual_block_forward.4} parent=11 // pred_check
        %p196 = pneg %p76
      $region22: #{residual_block_forward.4} parent=11 // pred_check_branch
        %198 = sbr.rel (%p196) target = $region24
      $region23: #{residual_block_forward.4} parent=11 // pred_region
        _
      $region24: #{residual_block_forward.4} parent=11 // pred_fallthru
        _
      // Predicated region
      $region25: #{residual_block_forward.4} parent=11 // pred_check
        %p199 = pneg %p97
      $region26: #{residual_block_forward.4} parent=11 // pred_check_branch
        %201 = sbr.rel (%p199) target = $region28
      $region27: #{residual_block_forward.4} parent=11 // pred_region
        _
      $region28: #{residual_block_forward.4} parent=11 // pred_fallthru
        _
    $region12: #{residual_block_forward.4} parent=5 // pred_fallthru
      _
    %p202 = scmp.lt.s32.totalorder %s13, 2
    // Predicated region
    $region29: #{residual_block_forward.4} parent=5 // pred_check
      %p203 = pneg %p202
    $region30: #{residual_block_forward.4} parent=5 // pred_check_branch
      %205 = sbr.rel (%p203) target = $region32
    $region31: #{residual_block_forward.4} parent=5 // pred_region
      // Predicated region
      $region33: #{residual_block_forward.4} parent=31 // pred_check
        %p206 = pneg %p117
      $region34: #{residual_block_forward.4} parent=31 // pred_check_branch
        %208 = sbr.rel (%p206) target = $region36
      $region35: #{residual_block_forward.4} parent=31 // pred_region
        %p209 = scmp.lt.s32.totalorder %s13, 1
        %s210 = scalar_select %p209, %s13, 1
        %s211 = smul.addr %s210, 3
        %s212 = smul.addr %s211, 8
        %s213 = scalar_lea.vmem %s4, %s212
      $region36: #{residual_block_forward.4} parent=31 // pred_fallthru
        _
    $region32: #{residual_block_forward.4} parent=5 // pred_fallthru
      _
    %p214 = scmp.le.s32.totalorder 1, %s13
    %p215 = scmp.lt.s32.totalorder %s13, 3
    %p216 = pnand %p214, %p215
    %p217 = pneg %p216
    // Predicated region
    $region37: #{residual_block_forward.4} parent=5 // pred_check
      _
    $region38: #{residual_block_forward.4} parent=5 // pred_check_branch
      %219 = sbr.rel (%p216) target = $region40
    $region39: #{residual_block_forward.4} parent=5 // pred_region
      %s220 = ssub.s32 %s13, 1
      %p221 = pneg %p34
      %p222 = pneg %p31
      %p223 = pneg %p55
      %p224 = pneg %p52
      %p225 = pneg %p76
      %p226 = pneg %p73
      %p227 = pneg %p97
      %p228 = pneg %p94
      %p229 = scmp.lt.s32.totalorder %s18, 1
      %s230 = scalar_select %p229, %s18, 1
      %s231 = smul.addr %s230, 3
      %s232 = smul.addr %s231, 8
      %s233 = scalar_lea.vmem %s4, %s232
      %p234 = pneg %p123
      %p235 = pneg %p120
      %p236 = pneg %p149
      %p237 = pneg %p146
      %p238 = scmp.lt.s32.totalorder %s18, 1
      %s239 = scalar_select %p238, %s18, 1
      %s240 = smul.addr %s239, 3
      %s241 = smul.addr %s240, 8
      %s242 = scalar_lea.vmem %s5, %s241
      %p243 = pneg %p175
      %p244 = pneg %p172
      %p245 = scmp.lt.s32.totalorder %s18, 1
      %s246 = scalar_select %p245, %s18, 1
      %s247 = smul.addr %s246, 8
      %s248 = scalar_lea.vmem %s6, %s247
      %p249 = scmp.lt.s32.totalorder %s18, 1
      %s250 = scalar_select %p249, %s18, 1
      %s251 = smul.addr %s250, 3
      %s252 = smul.addr %s251, 8
      %s253 = scalar_lea.vmem %s4, %s252
      %p254 = scmp.lt.s32.totalorder %s18, 1
      %s255 = scalar_select %p254, %s18, 1
      %s256 = smul.addr %s255, 3
      %s257 = smul.addr %s256, 8
      %s258 = scalar_lea.vmem %s5, %s257
      %p259 = scmp.lt.s32.totalorder %s18, 1
      %s260 = scalar_select %p259, %s18, 1
      %s261 = smul.addr %s260, 8
      %s262 = scalar_lea.vmem %s6, %s261
      %v263 = vld [vmem:[%s253] sm:$0xff]
      %v264 = vld [vmem:[%s253 + $0x8] sm:$0xff]
      %v265 = vld [vmem:[%s253 + $0x10] sm:$0xff]
      %v266 = vld [vmem:[%s3] sm:$0x7]
      %v267 = vld [vmem:[%s1] sm:$0xff]
      %269 = vset.pattern.permute.xlu0 0
      %270 = vperm.xlu0 %269, %v267
      %v271 = vpop.permute.xlu0 %270
      %v273 = vmul.f32 %v263, %v271
      %v274 = vmul.f32 %v264, %v271
      %v275 = vmul.f32 %v265, %v271
      %v276 = vld [vmem:[%s2] sm:$0xff]
      %278 = vset.pattern.permute.xlu0 0
      %279 = vperm.xlu0 %278, %v276
      %v280 = vpop.permute.xlu0 %279
      %v282 = vadd.f32 %v273, %v280
      %v283 = vadd.f32 %v274, %v280
      %v284 = vadd.f32 %v275, %v280
      %v285 = vmax.f32 %v282, 0.0
      %v286 = vmax.f32 %v283, 0.0
      %v287 = vmax.f32 %v284, 0.0
      %v289 = vperm.slane %v266, 0
      %v290 = vperm.slane %v266, 1
      %v291 = vperm.slane %v266, 2
      %v295 = vmul.f32 %v285, %v289
      %v296 = vmul.f32 %v286, %v290
      %v297 = vmul.f32 %v287, %v291
      %299 = vrot.lane.b32.xlu0 %v297, 19
      %v300 = vpop.permute.xlu0 %299
      %304 = vrot.lane.b32.xlu0 %v295, 19
      %v305 = vpop.permute.xlu0 %304
      %306 = vrot.lane.b32.xlu0 %v296, 19
      %v307 = vpop.permute.xlu0 %306
      %vm308 = vcmask 154624
      %v309 = vsel %vm308, %v305, %v307
      %v310 = vsel %vm308, %v307, %v300
      %v314 = vsel %vm308, %v300, %v305
      %315 = vrot.lane.b32.xlu0 %v297, 18
      %v316 = vpop.permute.xlu0 %315
      %318 = vrot.lane.b32.xlu0 %v295, 18
      %v319 = vpop.permute.xlu0 %318
      %320 = vrot.lane.b32.xlu0 %v296, 18
      %v321 = vpop.permute.xlu0 %320
      %vm322 = vcmask 146432
      %v323 = vsel %vm322, %v319, %v321
      %v324 = vsel %vm322, %v321, %v316
      %v328 = vsel %vm322, %v316, %v319
      %329 = vrot.lane.b32.xlu0 %v297, 17
      %v330 = vpop.permute.xlu0 %329
      %332 = vrot.lane.b32.xlu0 %v295, 17
      %v333 = vpop.permute.xlu0 %332
      %334 = vrot.lane.b32.xlu0 %v296, 17
      %v335 = vpop.permute.xlu0 %334
      %vm336 = vcmask 138240
      %v337 = vsel %vm336, %v333, %v335
      %v338 = vsel %vm336, %v335, %v330
      %v342 = vsel %vm336, %v330, %v333
      %343 = vrot.lane.b32.xlu0 %v297, 1
      %v344 = vpop.permute.xlu0 %343
      %346 = vrot.lane.b32.xlu0 %v295, 1
      %v347 = vpop.permute.xlu0 %346
      %348 = vrot.lane.b32.xlu0 %v296, 1
      %v349 = vpop.permute.xlu0 %348
      %vm350 = vcmask 7168
      %v351 = vsel %vm350, %v347, %v349
      %v352 = vsel %vm350, %v349, %v344
      %v356 = vsel %vm350, %v344, %v347
      %357 = vrot.lane.b32.xlu0 %v295, 127
      %v358 = vpop.permute.xlu0 %357
      %359 = vrot.lane.b32.xlu0 %v296, 127
      %v360 = vpop.permute.xlu0 %359
      %361 = vrot.lane.b32.xlu0 %v297, 127
      %v362 = vpop.permute.xlu0 %361
      %vm363 = vcmask 1039360
      %v364 = vsel %vm363, %v358, %v360
      %v365 = vsel %vm363, %v360, %v362
      %v370 = vsel %vm363, %v362, %v358
      %371 = vrot.lane.b32.xlu0 %v295, 111
      %v372 = vpop.permute.xlu0 %371
      %373 = vrot.lane.b32.xlu0 %v296, 111
      %v374 = vpop.permute.xlu0 %373
      %375 = vrot.lane.b32.xlu0 %v297, 111
      %v376 = vpop.permute.xlu0 %375
      %vm377 = vcmask 908288
      %v378 = vsel %vm377, %v372, %v374
      %v379 = vsel %vm377, %v374, %v376
      %v384 = vsel %vm377, %v376, %v372
      %385 = vrot.lane.b32.xlu0 %v295, 110
      %v386 = vpop.permute.xlu0 %385
      %387 = vrot.lane.b32.xlu0 %v296, 110
      %v388 = vpop.permute.xlu0 %387
      %389 = vrot.lane.b32.xlu0 %v297, 110
      %v390 = vpop.permute.xlu0 %389
      %vm391 = vcmask 900096
      %v392 = vsel %vm391, %v386, %v388
      %v393 = vsel %vm391, %v388, %v390
      %v398 = vsel %vm391, %v390, %v386
      %399 = vrot.lane.b32.xlu0 %v295, 109
      %v400 = vpop.permute.xlu0 %399
      %401 = vrot.lane.b32.xlu0 %v296, 109
      %v402 = vpop.permute.xlu0 %401
      %403 = vrot.lane.b32.xlu0 %v297, 109
      %v404 = vpop.permute.xlu0 %403
      %vm405 = vcmask 891904
      %v406 = vsel %vm405, %v400, %v402
      %v407 = vsel %vm405, %v402, %v404
      %v412 = vsel %vm405, %v404, %v400
      %v413 = vld [vmem:[%s0] sm:$0xff]
      %vm414 = vcmask 588800
      %v416 = vsel %vm414, %v413, 0
      %418 = vmatpush.msra.mxu0 0.0
      %419 = vmatpush.msra.mxu0 0.0
      %420 = vmatpush.msra.mxu0 0.0
      %421 = vmatpush.msra.mxu0 0.0
      %422 = vmatpush.msra.mxu0 0.0
      %423 = vmatpush.msra.mxu0 0.0
      %424 = vmatpush.msra.mxu0 0.0
      %425 = vmatpush.msra.mxu0 %v406
      %426 = vmatpush.msra.mxu0 %v392
      %427 = vmatpush.msra.mxu0 %v378
      %428 = vmatpush.msra.mxu0 %v364
      %429 = vmatpush.msra.mxu0 %v295
      %430 = vmatpush.msra.mxu0 %v356
      %431 = vmatpush.msra.mxu0 %v342
      %432 = vmatpush.msra.mxu0 %v328
      %433 = vmatpush.msra.mxu0 %v314
      %434 = vmatmul.f32.gmra.mxu0 %v416
      %v435 = vpop.f32.mrf.mxu0
      %v436 = vadd.f32 0.0, %v435
      %437 = vdwg.mxu0
      %438 = vmatpush.msra.mxu0 0.0
      %439 = vmatpush.msra.mxu0 0.0
      %440 = vmatpush.msra.mxu0 0.0
      %441 = vmatpush.msra.mxu0 0.0
      %442 = vmatpush.msra.mxu0 0.0
      %443 = vmatpush.msra.mxu0 0.0
      %444 = vmatpush.msra.mxu0 0.0
      %445 = vmatpush.msra.mxu0 %v407
      %446 = vmatpush.msra.mxu0 %v393
      %447 = vmatpush.msra.mxu0 %v379
      %448 = vmatpush.msra.mxu0 %v365
      %449 = vmatpush.msra.mxu0 %v296
      %450 = vmatpush.msra.mxu0 %v351
      %451 = vmatpush.msra.mxu0 %v337
      %452 = vmatpush.msra.mxu0 %v323
      %453 = vmatpush.msra.mxu0 %v309
      %454 = vmatmul.f32.gmra.mxu0 %v416
      %v455 = vpop.f32.mrf.mxu0
      %v456 = vadd.f32 0.0, %v455
      %457 = vdwg.mxu0
      %458 = vmatpush.msra.mxu0 0.0
      %459 = vmatpush.msra.mxu0 0.0
      %460 = vmatpush.msra.mxu0 0.0
      %461 = vmatpush.msra.mxu0 0.0
      %462 = vmatpush.msra.mxu0 0.0
      %463 = vmatpush.msra.mxu0 0.0
      %464 = vmatpush.msra.mxu0 0.0
      %465 = vmatpush.msra.mxu0 %v412
      %466 = vmatpush.msra.mxu0 %v398
      %467 = vmatpush.msra.mxu0 %v384
      %468 = vmatpush.msra.mxu0 %v370
      %469 = vmatpush.msra.mxu0 %v297
      %470 = vmatpush.msra.mxu0 %v352
      %471 = vmatpush.msra.mxu0 %v338
      %472 = vmatpush.msra.mxu0 %v324
      %473 = vmatpush.msra.mxu0 %v310
      %474 = vmatmul.f32.gmra.mxu0 %v416
      %v475 = vpop.f32.mrf.mxu0
      %v476 = vadd.f32 0.0, %v475
      %477 = vdwg.mxu0
      %v478 = vmul.f32 %v436, %v289
      %v479 = vmul.f32 %v456, %v290
      %v480 = vmul.f32 %v476, %v291
      %481 = vst [vmem:[%s258] sm:$0xff] %v478
      %482 = vst [vmem:[%s258 + $0x8] sm:$0xff] %v479
      %483 = vst [vmem:[%s258 + $0x10] sm:$0xff] %v480
      %v484 = vadd.f32 %v478, %v479
      %v485 = vadd.f32 %v484, %v480
      %486 = vadd.xlane.f32.xlu0 %v485
      %v487 = vpop.xlane.xlu0 %486
      %v488 = vmul.f32 %v478, %v478
      %v489 = vmul.f32 %v479, %v479
      %v490 = vmul.f32 %v480, %v480
      %v491 = vadd.f32 %v488, %v489
      %v492 = vadd.f32 %v491, %v490
      %493 = vadd.xlane.f32.xlu0 %v492
      %v494 = vpop.xlane.xlu0 %493
      %v495 = vsel %vm350, %v487, %v494
      %vm496 = vcmask 15360
      %497 = vst.msk [vmem:[%s262] sm:$0xff] %vm496, %v495
      %p498 = scmp.lt.s32.totalorder %s18, 1
      %s499 = scalar_select %p498, %s18, 1
      %s500 = smul.addr %s499, 3
      %s501 = smul.addr %s500, 8
      %s502 = scalar_lea.vmem %s5, %s501
      %p503 = scmp.lt.s32.totalorder %s18, 1
      %s504 = scalar_select %p503, %s18, 1
      %s505 = smul.addr %s504, 8
      %s506 = scalar_lea.vmem %s6, %s505
      // Predicated region
      $region41: #{residual_block_forward.4} parent=39 // pred_check
        %p507 = pneg %p146
      $region42: #{residual_block_forward.4} parent=39 // pred_check_branch
        %509 = sbr.rel (%p507) target = $region44
      $region43: #{residual_block_forward.4} parent=39 // pred_region
        _
      $region44: #{residual_block_forward.4} parent=39 // pred_fallthru
        _
      // Predicated region
      $region45: #{residual_block_forward.4} parent=39 // pred_check
        %p510 = pneg %p172
      $region46: #{residual_block_forward.4} parent=39 // pred_check_branch
        %512 = sbr.rel (%p510) target = $region48
      $region47: #{residual_block_forward.4} parent=39 // pred_region
        _
      $region48: #{residual_block_forward.4} parent=39 // pred_fallthru
        _
    $region40: #{residual_block_forward.4} parent=5 // pred_fallthru
      _
    %p513 = scmp.le.s32.totalorder 2, %s13
    // Predicated region
    $region49: #{residual_block_forward.4} parent=5 // pred_check
      %p514 = pneg %p513
    $region50: #{residual_block_forward.4} parent=5 // pred_check_branch
      %516 = sbr.rel (%p514) target = $region52
    $region51: #{residual_block_forward.4} parent=5 // pred_region
      %s517 = ssub.s32 %s13, 2
      // Predicated region
      $region53: #{residual_block_forward.4} parent=51 // pred_check
        %p518 = pneg %p152
      $region54: #{residual_block_forward.4} parent=51 // pred_check_branch
        %520 = sbr.rel (%p518) target = $region56
      $region55: #{residual_block_forward.4} parent=51 // pred_region
        %p521 = scmp.lt.s32.totalorder %s19, 1
        %s522 = scalar_select %p521, %s19, 1
        %s523 = smul.addr %s522, 3
        %s524 = smul.addr %s523, 8
        %s525 = scalar_lea.vmem %s5, %s524
      $region56: #{residual_block_forward.4} parent=51 // pred_fallthru
        _
      // Predicated region
      $region57: #{residual_block_forward.4} parent=51 // pred_check
        %p526 = pneg %p178
      $region58: #{residual_block_forward.4} parent=51 // pred_check_branch
        %528 = sbr.rel (%p526) target = $region60
      $region59: #{residual_block_forward.4} parent=51 // pred_region
        %p529 = scmp.lt.s32.totalorder %s19, 1
        %s530 = scalar_select %p529, %s19, 1
        %s531 = smul.addr %s530, 8
        %s532 = scalar_lea.vmem %s6, %s531
      $region60: #{residual_block_forward.4} parent=51 // pred_fallthru
        _
    $region52: #{residual_block_forward.4} parent=5 // pred_fallthru
      _
  $region6: #{residual_block_forward.4} parent=0 // loop_footer
    %s17 = sadd.s32 1, %s13
  $region7: #{residual_block_forward.4} parent=0 // loop_footer_branch
    %12 = sbr.rel target = $region3
  $region8: #{residual_block_forward.4} parent=0 // loop_exit
    _

</llo_original>
